<compile_context>
chip_gen: v7x
topology: tpu7x:2x2x1
jax: 0.10.0
libtpu: 0.0.40
codegen_flags: <defaults>
</compile_context>

<pallas_src>
import functools

import jax
import jax.numpy as jnp
from jax.experimental import pallas as pl
from jax.experimental.pallas import tpu as pltpu

# ---------------- synthetic opt / dyn configuration ----------------
T0 = 0.0          # opt.t0
T1 = 1.0          # opt.T
INTERVAL = 100    # opt.interval
SIGMA_MIN = 0.01  # opt.sigma_min
SIGMA_MAX = 1.0   # opt.sigma_max


def _policy_kernel(x_ref, t_ref, w1_ref, b1_ref, wt_ref, w2_ref, b2_ref, o_ref,
                   *, use_t_idx, convert_t_to_std, scale_by_g):
    """Fused forward, single grid step (everything VMEM-resident).

    x_ref : [BM, D]      bf16
    t_ref : [BM, 1]      f32
    w1    : [D, H]       bf16        b1, wt : [1, H] f32
    w2    : [H, D]       bf16        b2     : [1, D] f32
    o_ref : [BM, D]      f32 (or requested out dtype)
    """
    x = x_ref[...]                                   # bf16 [BM, D]
    t = t_ref[...]                                   # f32  [BM, 1]

    # --- t_input transformation (matches SchrodingerBridgePolicy.forward).
    # NOTE: the torch module computes the use_t_idx value first and then, if
    # convert_t_to_std, OVERWRITES it with sigma_min*(sigma_max/sigma_min)**t
    # (raw t).  We keep those semantics but skip the dead branch.
    if convert_t_to_std:
        t_in = SIGMA_MIN * jnp.exp(t * jnp.log(SIGMA_MAX / SIGMA_MIN))
    elif use_t_idx:
        dt = (T1 - T0) / (INTERVAL - 1)
        t_in = (t - T0) / dt
    else:
        t_in = t

    # --- net(x, t_input): time-conditioned MLP, both matmuls on the MXU.
    # bf16 operands, f32 accumulation.  Single grid step -> h computed once.
    h = jnp.dot(x, w1_ref[...], preferred_element_type=jnp.float32)   # [BM, H] f32
    h = h + b1_ref[...] + t_in * wt_ref[...]
    h = jnp.maximum(h, 0.0).astype(w2_ref.dtype)                      # -> bf16

    out = jnp.dot(h, w2_ref[...], preferred_element_type=jnp.float32)  # [BM, D] f32
    out = out + b2_ref[...]

    # --- scale_by_g: out *= dyn.g(t), g broadcast over all non-batch dims.
    if scale_by_g:
        log_ratio = jnp.log(SIGMA_MAX / SIGMA_MIN)
        g = SIGMA_MIN * jnp.exp(t * log_ratio) * jnp.sqrt(2.0 * log_ratio)  # [BM,1]
        out = out * g

    o_ref[...] = out.astype(o_ref.dtype)


def schrodinger_bridge_policy(x, t, params, *, use_t_idx=False,
                              convert_t_to_std=False, scale_by_g=True,
                              out_dtype=jnp.float32):
    """Forward pass. x: [B, C, H, W] (NCHW), t: scalar / [B] / [B,1].

    `out_dtype=jnp.bfloat16` halves output writeback if the sampler tolerates
    it; f32 is the default to match the torch module.
    """
    B, C, H, W = x.shape
    D = C * H * W

    # glue: t.squeeze() + scalar repeat (same semantics as the torch module)
    t = jnp.squeeze(t)
    if t.ndim == 0:
        t = jnp.broadcast_to(t, (B,))
    assert t.ndim == 1 and t.shape[0] == B

    # Pad batch to a multiple of 8 sublanes (full-sublane vregs, unmasked vst).
    BM = ((B + 7) // 8) * 8
    x_flat = x.reshape(B, D).astype(jnp.bfloat16)
    x_pad = jnp.pad(x_flat, ((0, BM - B), (0, 0)))
    t_col = jnp.pad(t.astype(jnp.float32).reshape(B, 1), ((0, BM - B), (0, 0)))

    # bf16 weights for the MXU, f32 biases / time embedding.
    w1 = params["w1"].astype(jnp.bfloat16)
    w2 = params["w2"].astype(jnp.bfloat16)
    b1 = params["b1"].astype(jnp.float32)
    wt = params["wt"].astype(jnp.float32)
    b2 = params["b2"].astype(jnp.float32)
    hidden = w1.shape[1]

    kernel = functools.partial(
        _policy_kernel,
        use_t_idx=use_t_idx,
        convert_t_to_std=convert_t_to_std,
        scale_by_g=scale_by_g,
    )

    # Single grid step: every operand fits VMEM, constant index maps, one
    # lane-dense (BM, D) output store.
    grid_spec = pltpu.PrefetchScalarGridSpec(
        num_scalar_prefetch=0,
        grid=(1,),
        in_specs=[
            pl.BlockSpec((BM, D), lambda j: (0, 0)),        # x
            pl.BlockSpec((BM, 1), lambda j: (0, 0)),        # t
            pl.BlockSpec((D, hidden), lambda j: (0, 0)),    # w1
            pl.BlockSpec((1, hidden), lambda j: (0, 0)),    # b1
            pl.BlockSpec((1, hidden), lambda j: (0, 0)),    # wt
            pl.BlockSpec((hidden, D), lambda j: (0, 0)),    # w2 (resident)
            pl.BlockSpec((1, D), lambda j: (0, 0)),         # b2 (resident)
        ],
        out_specs=pl.BlockSpec((BM, D), lambda j: (0, 0)),
    )

    # Advisory cost: the two matmuls (no recompute) plus the exp()'s for g.
    out_itemsize = jnp.dtype(out_dtype).itemsize
    flops = 4 * BM * D * hidden
    bytes_accessed = (x_pad.nbytes + t_col.nbytes + w1.nbytes + b1.nbytes
                      + wt.nbytes + w2.nbytes + b2.nbytes + BM * D * out_itemsize)
    cost = pl.CostEstimate(flops=int(flops),
                           transcendentals=int(2 * BM),
                           bytes_accessed=int(bytes_accessed))

    out_flat = pl.pallas_call(
        kernel,
        out_shape=jax.ShapeDtypeStruct((BM, D), out_dtype),
        grid_spec=grid_spec,
        compiler_params=pltpu.CompilerParams(
            dimension_semantics=("arbitrary",),
            # Right-sized: working set ~1.1 MB (x2 with buffering); leaves the
            # rest of v7x's 64 MiB physical VMEM to surrounding XLA fusions.
            vmem_limit_bytes=8 * 1024 * 1024,
        ),
        cost_estimate=cost,
    )(x_pad, t_col, w1, b1, wt, w2, b2)

    return out_flat[:B].astype(jnp.float32).reshape(B, C, H, W)


def _reference(x, t, params, *, use_t_idx=False, convert_t_to_std=False,
               scale_by_g=True):
    """Pure-JAX reference with the same bf16-operand / f32-accum precision."""
    B, C, H, W = x.shape
    D = C * H * W
    t = jnp.squeeze(t)
    if t.ndim == 0:
        t = jnp.broadcast_to(t, (B,))
    x_flat = x.reshape(B, D).astype(jnp.bfloat16)
    t_col = t.reshape(B, 1).astype(jnp.float32)
    if convert_t_to_std:
        t_in = SIGMA_MIN * (SIGMA_MAX / SIGMA_MIN) ** t_col
    elif use_t_idx:
        dt = (T1 - T0) / (INTERVAL - 1)
        t_in = (t_col - T0) / dt
    else:
        t_in = t_col
    w1 = params["w1"].astype(jnp.bfloat16)
    w2 = params["w2"].astype(jnp.bfloat16)
    h = jnp.dot(x_flat, w1, preferred_element_type=jnp.float32)
    h = h + params["b1"] + t_in * params["wt"]
    h = jnp.maximum(h, 0.0).astype(jnp.bfloat16)
    out = jnp.dot(h, w2, preferred_element_type=jnp.float32) + params["b2"]
    if scale_by_g:
        log_ratio = jnp.log(SIGMA_MAX / SIGMA_MIN)
        g = SIGMA_MIN * (SIGMA_MAX / SIGMA_MIN) ** t_col * jnp.sqrt(2.0 * log_ratio)
        out = out * g
    return out.reshape(B, C, H, W)


def init_params(key, d, hidden):
    k1, k2, k3, k4, k5 = jax.random.split(key, 5)
    scale1 = 1.0 / jnp.sqrt(d)
    scale2 = 1.0 / jnp.sqrt(hidden)
    return {
        "w1": jax.random.normal(k1, (d, hidden), jnp.float32) * scale1,
        "b1": jax.random.normal(k2, (1, hidden), jnp.float32) * 0.01,
        "wt": jax.random.normal(k3, (1, hidden), jnp.float32) * 0.1,
        "w2": jax.random.normal(k4, (hidden, d), jnp.float32) * scale2,
        "b2": jax.random.normal(k5, (1, d), jnp.float32) * 0.01,
    }


if __name__ == "__main__":
    B, C, H, W = 2, 4, 16, 16
    HIDDEN = 256
    D = C * H * W

    key = jax.random.PRNGKey(0)
    kx, kt, kp = jax.random.split(key, 3)

    x = jax.random.normal(kx, (B, C, H, W), jnp.float32)
    t = jax.random.uniform(kt, (B, 1), jnp.float32,
                           minval=T0, maxval=T1)          # exercises t.squeeze()
    params = init_params(kp, D, HIDDEN)

    out = schrodinger_bridge_policy(x, t, params,
                                    use_t_idx=False,
                                    convert_t_to_std=False,
                                    scale_by_g=True)
    out = jax.block_until_ready(out)

    ref = _reference(x, t, params, use_t_idx=False,
                     convert_t_to_std=False, scale_by_g=True)
    assert out.shape == (B, C, H, W)
    assert jnp.allclose(out, ref, atol=5e-3, rtol=5e-3), (
        float(jnp.max(jnp.abs(out - ref))))

    print("KERNEL_OK")
</pallas_src>

<mosaic_0001>
module attributes {stable_mosaic.version = 11 : i64} {
  func.func @_policy_kernel(%arg0: i32, %arg1: memref<8x1024xbf16, #tpu.memory_space<vmem>>, %arg2: memref<8x1xf32, #tpu.memory_space<vmem>>, %arg3: memref<1024x256xbf16, #tpu.memory_space<vmem>>, %arg4: memref<1x256xf32, #tpu.memory_space<vmem>>, %arg5: memref<1x256xf32, #tpu.memory_space<vmem>>, %arg6: memref<256x1024xbf16, #tpu.memory_space<vmem>>, %arg7: memref<1x1024xf32, #tpu.memory_space<vmem>>, %arg8: memref<8x1024xf32, #tpu.memory_space<vmem>>) attributes {dimension_semantics = [#tpu.dimension_semantics<arbitrary>], iteration_bounds = array<i64: 1>, scalar_prefetch = 0 : i64, scratch_operands = 0 : i64, tpu.core_type = #tpu.core_type<tc>, window_params = [{pipeline_mode = #tpu.pipeline_mode<synchronous>, transform_indices = @transform_0, window_bounds = array<i64: 8, 1024>}, {pipeline_mode = #tpu.pipeline_mode<synchronous>, transform_indices = @transform_1, window_bounds = array<i64: 8, 1>}, {pipeline_mode = #tpu.pipeline_mode<synchronous>, transform_indices = @transform_2, window_bounds = array<i64: 1024, 256>}, {pipeline_mode = #tpu.pipeline_mode<synchronous>, transform_indices = @transform_3, window_bounds = array<i64: 1, 256>}, {pipeline_mode = #tpu.pipeline_mode<synchronous>, transform_indices = @transform_4, window_bounds = array<i64: 1, 256>}, {pipeline_mode = #tpu.pipeline_mode<synchronous>, transform_indices = @transform_5, window_bounds = array<i64: 256, 1024>}, {pipeline_mode = #tpu.pipeline_mode<synchronous>, transform_indices = @transform_6, window_bounds = array<i64: 1, 1024>}, {pipeline_mode = #tpu.pipeline_mode<synchronous>, transform_indices = @transform_7, window_bounds = array<i64: 8, 1024>}]} {
    %c0 = arith.constant 0 : index
    %c0_0 = arith.constant 0 : index
    %0 = vector.load %arg1[%c0, %c0_0] : memref<8x1024xbf16, #tpu.memory_space<vmem>>, vector<8x1024xbf16>
    %c0_1 = arith.constant 0 : index
    %c0_2 = arith.constant 0 : index
    %1 = vector.load %arg2[%c0_1, %c0_2] : memref<8x1xf32, #tpu.memory_space<vmem>>, vector<8x1xf32>
    %c0_3 = arith.constant 0 : index
    %c0_4 = arith.constant 0 : index
    %2 = vector.load %arg3[%c0_3, %c0_4] : memref<1024x256xbf16, #tpu.memory_space<vmem>>, vector<1024x256xbf16>
    %cst = arith.constant dense<0.000000e+00> : vector<8x256xf32>
    %3 = tpu.matmul %0, %2, %cst {dimension_numbers = #tpu.dot_dimension_numbers<[1], [0], [0], [1], [0, 0, 1, 1], [], []>} : vector<8x1024xbf16>, vector<1024x256xbf16>, vector<8x256xf32> -> vector<8x256xf32>
    %c0_5 = arith.constant 0 : index
    %c0_6 = arith.constant 0 : index
    %4 = vector.load %arg4[%c0_5, %c0_6] : memref<1x256xf32, #tpu.memory_space<vmem>>, vector<1x256xf32>
    %5 = vector.broadcast %4 : vector<1x256xf32> to vector<8x256xf32>
    %6 = arith.addf %3, %5 : vector<8x256xf32>
    %c0_7 = arith.constant 0 : index
    %c0_8 = arith.constant 0 : index
    %7 = vector.load %arg5[%c0_7, %c0_8] : memref<1x256xf32, #tpu.memory_space<vmem>>, vector<1x256xf32>
    %8 = vector.broadcast %1 : vector<8x1xf32> to vector<8x256xf32>
    %9 = vector.broadcast %7 : vector<1x256xf32> to vector<8x256xf32>
    %10 = arith.mulf %8, %9 : vector<8x256xf32>
    %11 = arith.addf %6, %10 : vector<8x256xf32>
    %cst_9 = arith.constant 0.000000e+00 : f32
    %12 = vector.broadcast %cst_9 : f32 to vector<8x256xf32>
    %13 = arith.maximumf %11, %12 : vector<8x256xf32>
    %14 = arith.truncf %13 : vector<8x256xf32> to vector<8x256xbf16>
    %c0_10 = arith.constant 0 : index
    %c0_11 = arith.constant 0 : index
    %15 = vector.load %arg6[%c0_10, %c0_11] : memref<256x1024xbf16, #tpu.memory_space<vmem>>, vector<256x1024xbf16>
    %cst_12 = arith.constant dense<0.000000e+00> : vector<8x1024xf32>
    %16 = tpu.matmul %14, %15, %cst_12 {dimension_numbers = #tpu.dot_dimension_numbers<[1], [0], [0], [1], [0, 0, 1, 1], [], []>} : vector<8x256xbf16>, vector<256x1024xbf16>, vector<8x1024xf32> -> vector<8x1024xf32>
    %c0_13 = arith.constant 0 : index
    %c0_14 = arith.constant 0 : index
    %17 = vector.load %arg7[%c0_13, %c0_14] : memref<1x1024xf32, #tpu.memory_space<vmem>>, vector<1x1024xf32>
    %18 = vector.broadcast %17 : vector<1x1024xf32> to vector<8x1024xf32>
    %19 = arith.addf %16, %18 : vector<8x1024xf32>
    %cst_15 = arith.constant 1.000000e+02 : f32
    %20 = math.log %cst_15 : f32
    %21 = vector.broadcast %20 : f32 to vector<8x1xf32>
    %22 = arith.mulf %1, %21 : vector<8x1xf32>
    %23 = math.exp %22 : vector<8x1xf32>
    %cst_16 = arith.constant 0.00999999977 : f32
    %24 = vector.broadcast %cst_16 : f32 to vector<8x1xf32>
    %25 = arith.mulf %24, %23 : vector<8x1xf32>
    %cst_17 = arith.constant 2.000000e+00 : f32
    %26 = arith.mulf %cst_17, %20 : f32
    %27 = math.sqrt %26 : f32
    %28 = vector.broadcast %27 : f32 to vector<8x1xf32>
    %29 = arith.mulf %25, %28 : vector<8x1xf32>
    %30 = vector.broadcast %29 : vector<8x1xf32> to vector<8x1024xf32>
    %31 = arith.mulf %19, %30 : vector<8x1024xf32>
    %c0_18 = arith.constant 0 : index
    %c0_19 = arith.constant 0 : index
    %32 = vector.load %arg8[%c0_18, %c0_19] : memref<8x1024xf32, #tpu.memory_space<vmem>>, vector<8x1024xf32>
    tpu.vector_store %arg8[%c0_18, %c0_19], %31 {strides = array<i32>} : memref<8x1024xf32, #tpu.memory_space<vmem>>, vector<8x1024xf32>,
    return
  }
  func.func @transform_0(%arg0: i32) -> (i32, i32) {
    %c0_i32 = arith.constant 0 : i32
    %c0_i32_0 = arith.constant 0 : i32
    %c0_i32_1 = arith.constant 0 : i32
    return %c0_i32, %c0_i32_0 : i32, i32
  }
  func.func @transform_1(%arg0: i32) -> (i32, i32) {
    %c0_i32 = arith.constant 0 : i32
    %c0_i32_0 = arith.constant 0 : i32
    %c0_i32_1 = arith.constant 0 : i32
    return %c0_i32, %c0_i32_0 : i32, i32
  }
  func.func @transform_2(%arg0: i32) -> (i32, i32) {
    %c0_i32 = arith.constant 0 : i32
    %c0_i32_0 = arith.constant 0 : i32
    %c0_i32_1 = arith.constant 0 : i32
    return %c0_i32, %c0_i32_0 : i32, i32
  }
  func.func @transform_3(%arg0: i32) -> (i32, i32) {
    %c0_i32 = arith.constant 0 : i32
    %c0_i32_0 = arith.constant 0 : i32
    %c0_i32_1 = arith.constant 0 : i32
    return %c0_i32, %c0_i32_0 : i32, i32
  }
  func.func @transform_4(%arg0: i32) -> (i32, i32) {
    %c0_i32 = arith.constant 0 : i32
    %c0_i32_0 = arith.constant 0 : i32
    %c0_i32_1 = arith.constant 0 : i32
    return %c0_i32, %c0_i32_0 : i32, i32
  }
  func.func @transform_5(%arg0: i32) -> (i32, i32) {
    %c0_i32 = arith.constant 0 : i32
    %c0_i32_0 = arith.constant 0 : i32
    %c0_i32_1 = arith.constant 0 : i32
    return %c0_i32, %c0_i32_0 : i32, i32
  }
  func.func @transform_6(%arg0: i32) -> (i32, i32) {
    %c0_i32 = arith.constant 0 : i32
    %c0_i32_0 = arith.constant 0 : i32
    %c0_i32_1 = arith.constant 0 : i32
    return %c0_i32, %c0_i32_0 : i32, i32
  }
  func.func @transform_7(%arg0: i32) -> (i32, i32) {
    %c0_i32 = arith.constant 0 : i32
    %c0_i32_0 = arith.constant 0 : i32
    %c0_i32_1 = arith.constant 0 : i32
    return %c0_i32, %c0_i32_0 : i32, i32
  }
}

</mosaic_0001>

<llo_original>
// kernel: tpu_custom_call.1
$region0: #{tpu_custom_call.1}
  #allocation0 [shape = 'u32[]', space=smem, size = 0x4, offset = 0x4, fixed_abs, tag = 'smem constant byte address 0x4 - core index']
  #allocation1 [shape = 'u32[144,128]{1,0:T(1,128)}', space=vmem, size = 0x12000, scoped, tag = 'internal scratch']
  %s0 = inlined_call_operand.hbm [shape: bf16[8,1024], index: 0, kind: input, shape index: {}]
  %s1 = inlined_call_operand.vmem [shape: f32[8,1], index: 1, kind: input, shape index: {}]
  %s2 = inlined_call_operand.hbm [shape: bf16[1024,256], index: 2, kind: input, shape index: {}]
  %s3 = inlined_call_operand.vmem [shape: f32[1,256], index: 3, kind: input, shape index: {}]
  %s4 = inlined_call_operand.vmem [shape: f32[1,256], index: 4, kind: input, shape index: {}]
  %s5 = inlined_call_operand.hbm [shape: bf16[256,1024], index: 5, kind: input, shape index: {}]
  %s6 = inlined_call_operand.vmem [shape: f32[1,1024], index: 6, kind: input, shape index: {}]
  %s7 = inlined_call_operand.hbm [shape: f32[8,1024], index: 7, kind: output, shape index: {}]
  %s8 = sld [smem:[#allocation0]]
  $region50: #{tpu_custom_call.1} parent=0
    _
  %s10 = ssub.s32 1, %s8
  %s11 = scalar_select 0, %s10, %s8
  $region1: #{tpu_custom_call.1} parent=0
    #allocation2 [shape = 'u8[16384]{0}', space=vmem, size = 0x4000, scoped, tag = 'input window, operand 0, single buffered']
    #allocation3 [shape = 's32[1]{0}', space=sflag, size = 0x4, scoped, tag = 'scoped memory for tpu_custom_call.1']
    #allocation4 [shape = 's32[1]{0}', space=sflag, size = 0x4, scoped, tag = 'scoped memory for tpu_custom_call.1']
    #allocation5 [shape = 'u8[524288]{0}', space=vmem, size = 0x80000, scoped, tag = 'input window, operand 2, single buffered']
    #allocation6 [shape = 's32[1]{0}', space=sflag, size = 0x4, scoped, tag = 'scoped memory for tpu_custom_call.1']
    #allocation7 [shape = 'u8[524288]{0}', space=vmem, size = 0x80000, scoped, tag = 'input window, operand 5, single buffered']
    #allocation8 [shape = 'u8[32768]{0}', space=vmem, size = 0x8000, scoped, tag = 'output window, operand 0, single buffered']
    %12 = vsyncpa [#allocation3], 0
    %13 = vsyncpa [#allocation6], 0
    %14 = vsyncpa [#allocation4], 0
    // Predicated region
    $region2: #{tpu_custom_call.1} parent=1 // pred_check
      _
    $region3: #{tpu_custom_call.1} parent=1 // pred_check_branch
      %16 = sbr.rel (0) target = $region5
    $region4: #{tpu_custom_call.1} parent=1 // pred_region
      %s18 = ssub.s32 512, 512
      %19 = vsyncadd [#allocation3], %s18
      %s21 = sshll.u32 [#allocation2], 4
      %s22 = int_to_ptr.vmem [resolvable:$true] %s21
      %24 = dma.hbm_to_vmem [thread:$0]  %s0, 512, %s22, [#allocation3]
    $region5: #{tpu_custom_call.1} parent=1 // pred_fallthru
      _
    // Predicated region
    $region6: #{tpu_custom_call.1} parent=1 // pred_check
      _
    $region7: #{tpu_custom_call.1} parent=1 // pred_check_branch
      %26 = sbr.rel (0) target = $region9
    $region8: #{tpu_custom_call.1} parent=1 // pred_region
      _
    $region9: #{tpu_custom_call.1} parent=1 // pred_fallthru
      _
    // Predicated region
    $region10: #{tpu_custom_call.1} parent=1 // pred_check
      _
    $region11: #{tpu_custom_call.1} parent=1 // pred_check_branch
      %28 = sbr.rel (0) target = $region13
    $region12: #{tpu_custom_call.1} parent=1 // pred_region
      %s30 = ssub.s32 16384, 16384
      %31 = vsyncadd [#allocation6], %s30
      %s32 = sshll.u32 [#allocation5], 4
      %s33 = int_to_ptr.vmem [resolvable:$true] %s32
      %38 = dma.hbm_to_vmem [thread:$0]  %s2, 16384, %s33, [#allocation6], 128, 128, 8
    $region13: #{tpu_custom_call.1} parent=1 // pred_fallthru
      _
    // Predicated region
    $region14: #{tpu_custom_call.1} parent=1 // pred_check
      _
    $region15: #{tpu_custom_call.1} parent=1 // pred_check_branch
      %40 = sbr.rel (0) target = $region17
    $region16: #{tpu_custom_call.1} parent=1 // pred_region
      _
    $region17: #{tpu_custom_call.1} parent=1 // pred_fallthru
      _
    // Predicated region
    $region18: #{tpu_custom_call.1} parent=1 // pred_check
      _
    $region19: #{tpu_custom_call.1} parent=1 // pred_check_branch
      %42 = sbr.rel (0) target = $region21
    $region20: #{tpu_custom_call.1} parent=1 // pred_region
      _
    $region21: #{tpu_custom_call.1} parent=1 // pred_fallthru
      _
    // Predicated region
    $region22: #{tpu_custom_call.1} parent=1 // pred_check
      _
    $region23: #{tpu_custom_call.1} parent=1 // pred_check_branch
      %44 = sbr.rel (0) target = $region25
    $region24: #{tpu_custom_call.1} parent=1 // pred_region
      %s46 = ssub.s32 16384, 16384
      %47 = vsyncadd [#allocation6], %s46
      %s48 = sshll.u32 [#allocation7], 4
      %s49 = int_to_ptr.vmem [resolvable:$true] %s48
      %54 = dma.hbm_to_vmem [thread:$0]  %s5, 16384, %s49, [#allocation6], 512, 512, 32
    $region25: #{tpu_custom_call.1} parent=1 // pred_fallthru
      _
    // Predicated region
    $region26: #{tpu_custom_call.1} parent=1 // pred_check
      _
    $region27: #{tpu_custom_call.1} parent=1 // pred_check_branch
      %56 = sbr.rel (0) target = $region29
    $region28: #{tpu_custom_call.1} parent=1 // pred_region
      _
    $region29: #{tpu_custom_call.1} parent=1 // pred_fallthru
      _
    // Predicated region
    $region30: #{tpu_custom_call.1} parent=1 // pred_check
      _
    $region31: #{tpu_custom_call.1} parent=1 // pred_check_branch
      %58 = sbr.rel (0) target = $region33
    $region32: #{tpu_custom_call.1} parent=1 // pred_region
      %59 = dma.done [#allocation3], 512
    $region33: #{tpu_custom_call.1} parent=1 // pred_fallthru
      _
    // Predicated region
    $region34: #{tpu_custom_call.1} parent=1 // pred_check
      _
    $region35: #{tpu_custom_call.1} parent=1 // pred_check_branch
      %61 = sbr.rel (0) target = $region37
    $region36: #{tpu_custom_call.1} parent=1 // pred_region
      %62 = dma.done [#allocation6], 16384
    $region37: #{tpu_custom_call.1} parent=1 // pred_fallthru
      _
    // Predicated region
    $region38: #{tpu_custom_call.1} parent=1 // pred_check
      _
    $region39: #{tpu_custom_call.1} parent=1 // pred_check_branch
      %64 = sbr.rel (0) target = $region41
    $region40: #{tpu_custom_call.1} parent=1 // pred_region
      %65 = dma.done [#allocation6], 16384
    $region41: #{tpu_custom_call.1} parent=1 // pred_fallthru
      _
    %v66 = vld [vmem:[#allocation2] sm:$0xff]
    %v67 = vld [vmem:[#allocation2 + $0x8] sm:$0xff]
    %v68 = vld [vmem:[#allocation2 + $0x10] sm:$0xff]
    %v69 = vld [vmem:[#allocation2 + $0x18] sm:$0xff]
    %v70 = vld [vmem:[%s1] sm:$0xff]
    %v71 = vld [vmem:[#allocation5] sm:$0xff]
    %v72 = vld [vmem:[#allocation5 + $0x8] sm:$0xff]
    %v73 = vld [vmem:[#allocation5 + $0x10] sm:$0xff]
    %v74 = vld [vmem:[#allocation5 + $0x18] sm:$0xff]
    %v75 = vld [vmem:[#allocation5 + $0x20] sm:$0xff]
    %v76 = vld [vmem:[#allocation5 + $0x28] sm:$0xff]
    %v77 = vld [vmem:[#allocation5 + $0x30] sm:$0xff]
    %v78 = vld [vmem:[#allocation5 + $0x38] sm:$0xff]
    %v79 = vld [vmem:[#allocation5 + $0x40] sm:$0xff]
    %v80 = vld [vmem:[#allocation5 + $0x48] sm:$0xff]
    %v81 = vld [vmem:[#allocation5 + $0x50] sm:$0xff]
    %v82 = vld [vmem:[#allocation5 + $0x58] sm:$0xff]
    %v83 = vld [vmem:[#allocation5 + $0x60] sm:$0xff]
    %v84 = vld [vmem:[#allocation5 + $0x68] sm:$0xff]
    %v85 = vld [vmem:[#allocation5 + $0x70] sm:$0xff]
    %v86 = vld [vmem:[#allocation5 + $0x78] sm:$0xff]
    %v87 = vld [vmem:[#allocation5 + $0x80] sm:$0xff]
    %v88 = vld [vmem:[#allocation5 + $0x88] sm:$0xff]
    %v89 = vld [vmem:[#allocation5 + $0x90] sm:$0xff]
    %v90 = vld [vmem:[#allocation5 + $0x98] sm:$0xff]
    %v91 = vld [vmem:[#allocation5 + $0xa0] sm:$0xff]
    %v92 = vld [vmem:[#allocation5 + $0xa8] sm:$0xff]
    %v93 = vld [vmem:[#allocation5 + $0xb0] sm:$0xff]
    %v94 = vld [vmem:[#allocation5 + $0xb8] sm:$0xff]
    %v95 = vld [vmem:[#allocation5 + $0xc0] sm:$0xff]
    %v96 = vld [vmem:[#allocation5 + $0xc8] sm:$0xff]
    %v97 = vld [vmem:[#allocation5 + $0xd0] sm:$0xff]
    %v98 = vld [vmem:[#allocation5 + $0xd8] sm:$0xff]
    %v99 = vld [vmem:[#allocation5 + $0xe0] sm:$0xff]
    %v100 = vld [vmem:[#allocation5 + $0xe8] sm:$0xff]
    %v101 = vld [vmem:[#allocation5 + $0xf0] sm:$0xff]
    %v102 = vld [vmem:[#allocation5 + $0xf8] sm:$0xff]
    %v103 = vld [vmem:[#allocation5 + $0x100] sm:$0xff]
    %v104 = vld [vmem:[#allocation5 + $0x108] sm:$0xff]
    %v105 = vld [vmem:[#allocation5 + $0x110] sm:$0xff]
    %v106 = vld [vmem:[#allocation5 + $0x118] sm:$0xff]
    %v107 = vld [vmem:[#allocation5 + $0x120] sm:$0xff]
    %v108 = vld [vmem:[#allocation5 + $0x128] sm:$0xff]
    %v109 = vld [vmem:[#allocation5 + $0x130] sm:$0xff]
    %v110 = vld [vmem:[#allocation5 + $0x138] sm:$0xff]
    %v111 = vld [vmem:[#allocation5 + $0x140] sm:$0xff]
    %v112 = vld [vmem:[#allocation5 + $0x148] sm:$0xff]
    %v113 = vld [vmem:[#allocation5 + $0x150] sm:$0xff]
    %v114 = vld [vmem:[#allocation5 + $0x158] sm:$0xff]
    %v115 = vld [vmem:[#allocation5 + $0x160] sm:$0xff]
    %v116 = vld [vmem:[#allocation5 + $0x168] sm:$0xff]
    %v117 = vld [vmem:[#allocation5 + $0x170] sm:$0xff]
    %v118 = vld [vmem:[#allocation5 + $0x178] sm:$0xff]
    %v119 = vld [vmem:[#allocation5 + $0x180] sm:$0xff]
    %v120 = vld [vmem:[#allocation5 + $0x188] sm:$0xff]
    %v121 = vld [vmem:[#allocation5 + $0x190] sm:$0xff]
    %v122 = vld [vmem:[#allocation5 + $0x198] sm:$0xff]
    %v123 = vld [vmem:[#allocation5 + $0x1a0] sm:$0xff]
    %v124 = vld [vmem:[#allocation5 + $0x1a8] sm:$0xff]
    %v125 = vld [vmem:[#allocation5 + $0x1b0] sm:$0xff]
    %v126 = vld [vmem:[#allocation5 + $0x1b8] sm:$0xff]
    %v127 = vld [vmem:[#allocation5 + $0x1c0] sm:$0xff]
    %v128 = vld [vmem:[#allocation5 + $0x1c8] sm:$0xff]
    %v129 = vld [vmem:[#allocation5 + $0x1d0] sm:$0xff]
    %v130 = vld [vmem:[#allocation5 + $0x1d8] sm:$0xff]
    %v131 = vld [vmem:[#allocation5 + $0x1e0] sm:$0xff]
    %v132 = vld [vmem:[#allocation5 + $0x1e8] sm:$0xff]
    %v133 = vld [vmem:[#allocation5 + $0x1f0] sm:$0xff]
    %v134 = vld [vmem:[#allocation5 + $0x1f8] sm:$0xff]
    %v135 = vld [vmem:[#allocation5 + $0x200] sm:$0xff]
    %v136 = vld [vmem:[#allocation5 + $0x208] sm:$0xff]
    %v137 = vld [vmem:[#allocation5 + $0x210] sm:$0xff]
    %v138 = vld [vmem:[#allocation5 + $0x218] sm:$0xff]
    %v139 = vld [vmem:[#allocation5 + $0x220] sm:$0xff]
    %v140 = vld [vmem:[#allocation5 + $0x228] sm:$0xff]
    %v141 = vld [vmem:[#allocation5 + $0x230] sm:$0xff]
    %v142 = vld [vmem:[#allocation5 + $0x238] sm:$0xff]
    %v143 = vld [vmem:[#allocation5 + $0x240] sm:$0xff]
    %v144 = vld [vmem:[#allocation5 + $0x248] sm:$0xff]
    %v145 = vld [vmem:[#allocation5 + $0x250] sm:$0xff]
    %v146 = vld [vmem:[#allocation5 + $0x258] sm:$0xff]
    %v147 = vld [vmem:[#allocation5 + $0x260] sm:$0xff]
    %v148 = vld [vmem:[#allocation5 + $0x268] sm:$0xff]
    %v149 = vld [vmem:[#allocation5 + $0x270] sm:$0xff]
    %v150 = vld [vmem:[#allocation5 + $0x278] sm:$0xff]
    %v151 = vld [vmem:[#allocation5 + $0x280] sm:$0xff]
    %v152 = vld [vmem:[#allocation5 + $0x288] sm:$0xff]
    %v153 = vld [vmem:[#allocation5 + $0x290] sm:$0xff]
    %v154 = vld [vmem:[#allocation5 + $0x298] sm:$0xff]
    %v155 = vld [vmem:[#allocation5 + $0x2a0] sm:$0xff]
    %v156 = vld [vmem:[#allocation5 + $0x2a8] sm:$0xff]
    %v157 = vld [vmem:[#allocation5 + $0x2b0] sm:$0xff]
    %v158 = vld [vmem:[#allocation5 + $0x2b8] sm:$0xff]
    %v159 = vld [vmem:[#allocation5 + $0x2c0] sm:$0xff]
    %v160 = vld [vmem:[#allocation5 + $0x2c8] sm:$0xff]
    %v161 = vld [vmem:[#allocation5 + $0x2d0] sm:$0xff]
    %v162 = vld [vmem:[#allocation5 + $0x2d8] sm:$0xff]
    %v163 = vld [vmem:[#allocation5 + $0x2e0] sm:$0xff]
    %v164 = vld [vmem:[#allocation5 + $0x2e8] sm:$0xff]
    %v165 = vld [vmem:[#allocation5 + $0x2f0] sm:$0xff]
    %v166 = vld [vmem:[#allocation5 + $0x2f8] sm:$0xff]
    %v167 = vld [vmem:[#allocation5 + $0x300] sm:$0xff]
    %v168 = vld [vmem:[#allocation5 + $0x308] sm:$0xff]
    %v169 = vld [vmem:[#allocation5 + $0x310] sm:$0xff]
    %v170 = vld [vmem:[#allocation5 + $0x318] sm:$0xff]
    %v171 = vld [vmem:[#allocation5 + $0x320] sm:$0xff]
    %v172 = vld [vmem:[#allocation5 + $0x328] sm:$0xff]
    %v173 = vld [vmem:[#allocation5 + $0x330] sm:$0xff]
    %v174 = vld [vmem:[#allocation5 + $0x338] sm:$0xff]
    %v175 = vld [vmem:[#allocation5 + $0x340] sm:$0xff]
    %v176 = vld [vmem:[#allocation5 + $0x348] sm:$0xff]
    %v177 = vld [vmem:[#allocation5 + $0x350] sm:$0xff]
    %v178 = vld [vmem:[#allocation5 + $0x358] sm:$0xff]
    %v179 = vld [vmem:[#allocation5 + $0x360] sm:$0xff]
    %v180 = vld [vmem:[#allocation5 + $0x368] sm:$0xff]
    %v181 = vld [vmem:[#allocation5 + $0x370] sm:$0xff]
    %v182 = vld [vmem:[#allocation5 + $0x378] sm:$0xff]
    %v183 = vld [vmem:[#allocation5 + $0x380] sm:$0xff]
    %v184 = vld [vmem:[#allocation5 + $0x388] sm:$0xff]
    %v185 = vld [vmem:[#allocation5 + $0x390] sm:$0xff]
    %v186 = vld [vmem:[#allocation5 + $0x398] sm:$0xff]
    %v187 = vld [vmem:[#allocation5 + $0x3a0] sm:$0xff]
    %v188 = vld [vmem:[#allocation5 + $0x3a8] sm:$0xff]
    %v189 = vld [vmem:[#allocation5 + $0x3b0] sm:$0xff]
    %v190 = vld [vmem:[#allocation5 + $0x3b8] sm:$0xff]
    %v191 = vld [vmem:[#allocation5 + $0x3c0] sm:$0xff]
    %v192 = vld [vmem:[#allocation5 + $0x3c8] sm:$0xff]
    %v193 = vld [vmem:[#allocation5 + $0x3d0] sm:$0xff]
    %v194 = vld [vmem:[#allocation5 + $0x3d8] sm:$0xff]
    %v195 = vld [vmem:[#allocation5 + $0x3e0] sm:$0xff]
    %v196 = vld [vmem:[#allocation5 + $0x3e8] sm:$0xff]
    %v197 = vld [vmem:[#allocation5 + $0x3f0] sm:$0xff]
    %v198 = vld [vmem:[#allocation5 + $0x3f8] sm:$0xff]
    %v199 = vld [vmem:[%s3] sm:$0x3]
    %v201 = vlaneseq
    %v202 = vshrl.u32 %v201, 7
    %v203 = vsub.s32 0, %v202
    %v204 = vrot.slane %v199, %v203
    %v205 = vlaneseq
    %v206 = vshrl.u32 %v205, 7
    %v207 = vsub.s32 1, %v206
    %v208 = vrot.slane %v199, %v207
    %v215 = vunpack.c.l.b16 %v66
    %v216 = vunpack.c.h.b16 %v66
    %v217 = vunpack.c.l.b16 %v67
    %v218 = vunpack.c.h.b16 %v67
    %v219 = vunpack.c.l.b16 %v68
    %v220 = vunpack.c.h.b16 %v68
    %v221 = vunpack.c.l.b16 %v69
    %v222 = vunpack.c.h.b16 %v69
    %v223 = vpack.c.b16 %v215, %v215
    %v224 = vpack.c.b16 %v216, %v216
    %v225 = vpack.c.b16 %v217, %v217
    %v226 = vpack.c.b16 %v218, %v218
    %v227 = vpack.c.b16 %v219, %v219
    %v228 = vpack.c.b16 %v220, %v220
    %v229 = vpack.c.b16 %v221, %v221
    %v230 = vpack.c.b16 %v222, %v222
    %v367 = vunpack.c.l.b16 %v71
    %v368 = vunpack.c.h.b16 %v71
    %v369 = vunpack.c.l.b16 %v72
    %v370 = vunpack.c.h.b16 %v72
    %v371 = vunpack.c.l.b16 %v73
    %v372 = vunpack.c.h.b16 %v73
    %v373 = vunpack.c.l.b16 %v74
    %v374 = vunpack.c.h.b16 %v74
    %v375 = vunpack.c.l.b16 %v75
    %v376 = vunpack.c.h.b16 %v75
    %v377 = vunpack.c.l.b16 %v76
    %v378 = vunpack.c.h.b16 %v76
    %v379 = vunpack.c.l.b16 %v77
    %v380 = vunpack.c.h.b16 %v77
    %v381 = vunpack.c.l.b16 %v78
    %v382 = vunpack.c.h.b16 %v78
    %v383 = vunpack.c.l.b16 %v79
    %v384 = vunpack.c.h.b16 %v79
    %v385 = vunpack.c.l.b16 %v80
    %v386 = vunpack.c.h.b16 %v80
    %v387 = vunpack.c.l.b16 %v81
    %v388 = vunpack.c.h.b16 %v81
    %v389 = vunpack.c.l.b16 %v82
    %v390 = vunpack.c.h.b16 %v82
    %v391 = vunpack.c.l.b16 %v83
    %v392 = vunpack.c.h.b16 %v83
    %v393 = vunpack.c.l.b16 %v84
    %v394 = vunpack.c.h.b16 %v84
    %v395 = vunpack.c.l.b16 %v85
    %v396 = vunpack.c.h.b16 %v85
    %v397 = vunpack.c.l.b16 %v86
    %v398 = vunpack.c.h.b16 %v86
    %v399 = vunpack.c.l.b16 %v87
    %v400 = vunpack.c.h.b16 %v87
    %v401 = vunpack.c.l.b16 %v88
    %v402 = vunpack.c.h.b16 %v88
    %v403 = vunpack.c.l.b16 %v89
    %v404 = vunpack.c.h.b16 %v89
    %v405 = vunpack.c.l.b16 %v90
    %v406 = vunpack.c.h.b16 %v90
    %v407 = vunpack.c.l.b16 %v91
    %v408 = vunpack.c.h.b16 %v91
    %v409 = vunpack.c.l.b16 %v92
    %v410 = vunpack.c.h.b16 %v92
    %v411 = vunpack.c.l.b16 %v93
    %v412 = vunpack.c.h.b16 %v93
    %v413 = vunpack.c.l.b16 %v94
    %v414 = vunpack.c.h.b16 %v94
    %v415 = vunpack.c.l.b16 %v95
    %v416 = vunpack.c.h.b16 %v95
    %v417 = vunpack.c.l.b16 %v96
    %v418 = vunpack.c.h.b16 %v96
    %v419 = vunpack.c.l.b16 %v97
    %v420 = vunpack.c.h.b16 %v97
    %v421 = vunpack.c.l.b16 %v98
    %v422 = vunpack.c.h.b16 %v98
    %v423 = vunpack.c.l.b16 %v99
    %v424 = vunpack.c.h.b16 %v99
    %v425 = vunpack.c.l.b16 %v100
    %v426 = vunpack.c.h.b16 %v100
    %v427 = vunpack.c.l.b16 %v101
    %v428 = vunpack.c.h.b16 %v101
    %v429 = vunpack.c.l.b16 %v102
    %v430 = vunpack.c.h.b16 %v102
    %v431 = vunpack.c.l.b16 %v103
    %v432 = vunpack.c.h.b16 %v103
    %v433 = vunpack.c.l.b16 %v104
    %v434 = vunpack.c.h.b16 %v104
    %v435 = vunpack.c.l.b16 %v105
    %v436 = vunpack.c.h.b16 %v105
    %v437 = vunpack.c.l.b16 %v106
    %v438 = vunpack.c.h.b16 %v106
    %v439 = vunpack.c.l.b16 %v107
    %v440 = vunpack.c.h.b16 %v107
    %v441 = vunpack.c.l.b16 %v108
    %v442 = vunpack.c.h.b16 %v108
    %v443 = vunpack.c.l.b16 %v109
    %v444 = vunpack.c.h.b16 %v109
    %v445 = vunpack.c.l.b16 %v110
    %v446 = vunpack.c.h.b16 %v110
    %v447 = vunpack.c.l.b16 %v111
    %v448 = vunpack.c.h.b16 %v111
    %v449 = vunpack.c.l.b16 %v112
    %v450 = vunpack.c.h.b16 %v112
    %v451 = vunpack.c.l.b16 %v113
    %v452 = vunpack.c.h.b16 %v113
    %v453 = vunpack.c.l.b16 %v114
    %v454 = vunpack.c.h.b16 %v114
    %v455 = vunpack.c.l.b16 %v115
    %v456 = vunpack.c.h.b16 %v115
    %v457 = vunpack.c.l.b16 %v116
    %v458 = vunpack.c.h.b16 %v116
    %v459 = vunpack.c.l.b16 %v117
    %v460 = vunpack.c.h.b16 %v117
    %v461 = vunpack.c.l.b16 %v118
    %v462 = vunpack.c.h.b16 %v118
    %v463 = vunpack.c.l.b16 %v119
    %v464 = vunpack.c.h.b16 %v119
    %v465 = vunpack.c.l.b16 %v120
    %v466 = vunpack.c.h.b16 %v120
    %v467 = vunpack.c.l.b16 %v121
    %v468 = vunpack.c.h.b16 %v121
    %v469 = vunpack.c.l.b16 %v122
    %v470 = vunpack.c.h.b16 %v122
    %v471 = vunpack.c.l.b16 %v123
    %v472 = vunpack.c.h.b16 %v123
    %v473 = vunpack.c.l.b16 %v124
    %v474 = vunpack.c.h.b16 %v124
    %v475 = vunpack.c.l.b16 %v125
    %v476 = vunpack.c.h.b16 %v125
    %v477 = vunpack.c.l.b16 %v126
    %v478 = vunpack.c.h.b16 %v126
    %v479 = vunpack.c.l.b16 %v127
    %v480 = vunpack.c.h.b16 %v127
    %v481 = vunpack.c.l.b16 %v128
    %v482 = vunpack.c.h.b16 %v128
    %v483 = vunpack.c.l.b16 %v129
    %v484 = vunpack.c.h.b16 %v129
    %v485 = vunpack.c.l.b16 %v130
    %v486 = vunpack.c.h.b16 %v130
    %v487 = vunpack.c.l.b16 %v131
    %v488 = vunpack.c.h.b16 %v131
    %v489 = vunpack.c.l.b16 %v132
    %v490 = vunpack.c.h.b16 %v132
    %v491 = vunpack.c.l.b16 %v133
    %v492 = vunpack.c.h.b16 %v133
    %v493 = vunpack.c.l.b16 %v134
    %v494 = vunpack.c.h.b16 %v134
    %v495 = vunpack.c.l.b16 %v135
    %v496 = vunpack.c.h.b16 %v135
    %v497 = vunpack.c.l.b16 %v136
    %v498 = vunpack.c.h.b16 %v136
    %v499 = vunpack.c.l.b16 %v137
    %v500 = vunpack.c.h.b16 %v137
    %v501 = vunpack.c.l.b16 %v138
    %v502 = vunpack.c.h.b16 %v138
    %v503 = vunpack.c.l.b16 %v139
    %v504 = vunpack.c.h.b16 %v139
    %v505 = vunpack.c.l.b16 %v140
    %v506 = vunpack.c.h.b16 %v140
    %v507 = vunpack.c.l.b16 %v141
    %v508 = vunpack.c.h.b16 %v141
    %v509 = vunpack.c.l.b16 %v142
    %v510 = vunpack.c.h.b16 %v142
    %v511 = vunpack.c.l.b16 %v143
    %v512 = vunpack.c.h.b16 %v143
    %v513 = vunpack.c.l.b16 %v144
    %v514 = vunpack.c.h.b16 %v144
    %v515 = vunpack.c.l.b16 %v145
    %v516 = vunpack.c.h.b16 %v145
    %v517 = vunpack.c.l.b16 %v146
    %v518 = vunpack.c.h.b16 %v146
    %v519 = vunpack.c.l.b16 %v147
    %v520 = vunpack.c.h.b16 %v147
    %v521 = vunpack.c.l.b16 %v148
    %v522 = vunpack.c.h.b16 %v148
    %v523 = vunpack.c.l.b16 %v149
    %v524 = vunpack.c.h.b16 %v149
    %v525 = vunpack.c.l.b16 %v150
    %v526 = vunpack.c.h.b16 %v150
    %v527 = vunpack.c.l.b16 %v151
    %v528 = vunpack.c.h.b16 %v151
    %v529 = vunpack.c.l.b16 %v152
    %v530 = vunpack.c.h.b16 %v152
    %v531 = vunpack.c.l.b16 %v153
    %v532 = vunpack.c.h.b16 %v153
    %v533 = vunpack.c.l.b16 %v154
    %v534 = vunpack.c.h.b16 %v154
    %v535 = vunpack.c.l.b16 %v155
    %v536 = vunpack.c.h.b16 %v155
    %v537 = vunpack.c.l.b16 %v156
    %v538 = vunpack.c.h.b16 %v156
    %v539 = vunpack.c.l.b16 %v157
    %v540 = vunpack.c.h.b16 %v157
    %v541 = vunpack.c.l.b16 %v158
    %v542 = vunpack.c.h.b16 %v158
    %v543 = vunpack.c.l.b16 %v159
    %v544 = vunpack.c.h.b16 %v159
    %v545 = vunpack.c.l.b16 %v160
    %v546 = vunpack.c.h.b16 %v160
    %v547 = vunpack.c.l.b16 %v161
    %v548 = vunpack.c.h.b16 %v161
    %v549 = vunpack.c.l.b16 %v162
    %v550 = vunpack.c.h.b16 %v162
    %v551 = vunpack.c.l.b16 %v163
    %v552 = vunpack.c.h.b16 %v163
    %v553 = vunpack.c.l.b16 %v164
    %v554 = vunpack.c.h.b16 %v164
    %v555 = vunpack.c.l.b16 %v165
    %v556 = vunpack.c.h.b16 %v165
    %v557 = vunpack.c.l.b16 %v166
    %v558 = vunpack.c.h.b16 %v166
    %v559 = vunpack.c.l.b16 %v167
    %v560 = vunpack.c.h.b16 %v167
    %v561 = vunpack.c.l.b16 %v168
    %v562 = vunpack.c.h.b16 %v168
    %v563 = vunpack.c.l.b16 %v169
    %v564 = vunpack.c.h.b16 %v169
    %v565 = vunpack.c.l.b16 %v170
    %v566 = vunpack.c.h.b16 %v170
    %v567 = vunpack.c.l.b16 %v171
    %v568 = vunpack.c.h.b16 %v171
    %v569 = vunpack.c.l.b16 %v172
    %v570 = vunpack.c.h.b16 %v172
    %v571 = vunpack.c.l.b16 %v173
    %v572 = vunpack.c.h.b16 %v173
    %v573 = vunpack.c.l.b16 %v174
    %v574 = vunpack.c.h.b16 %v174
    %v575 = vunpack.c.l.b16 %v175
    %v576 = vunpack.c.h.b16 %v175
    %v577 = vunpack.c.l.b16 %v176
    %v578 = vunpack.c.h.b16 %v176
    %v579 = vunpack.c.l.b16 %v177
    %v580 = vunpack.c.h.b16 %v177
    %v581 = vunpack.c.l.b16 %v178
    %v582 = vunpack.c.h.b16 %v178
    %v583 = vunpack.c.l.b16 %v179
    %v584 = vunpack.c.h.b16 %v179
    %v585 = vunpack.c.l.b16 %v180
    %v586 = vunpack.c.h.b16 %v180
    %v587 = vunpack.c.l.b16 %v181
    %v588 = vunpack.c.h.b16 %v181
    %v589 = vunpack.c.l.b16 %v182
    %v590 = vunpack.c.h.b16 %v182
    %v591 = vunpack.c.l.b16 %v183
    %v592 = vunpack.c.h.b16 %v183
    %v593 = vunpack.c.l.b16 %v184
    %v594 = vunpack.c.h.b16 %v184
    %v595 = vunpack.c.l.b16 %v185
    %v596 = vunpack.c.h.b16 %v185
    %v597 = vunpack.c.l.b16 %v186
    %v598 = vunpack.c.h.b16 %v186
    %v599 = vunpack.c.l.b16 %v187
    %v600 = vunpack.c.h.b16 %v187
    %v601 = vunpack.c.l.b16 %v188
    %v602 = vunpack.c.h.b16 %v188
    %v603 = vunpack.c.l.b16 %v189
    %v604 = vunpack.c.h.b16 %v189
    %v605 = vunpack.c.l.b16 %v190
    %v606 = vunpack.c.h.b16 %v190
    %v607 = vunpack.c.l.b16 %v191
    %v608 = vunpack.c.h.b16 %v191
    %v609 = vunpack.c.l.b16 %v192
    %v610 = vunpack.c.h.b16 %v192
    %v611 = vunpack.c.l.b16 %v193
    %v612 = vunpack.c.h.b16 %v193
    %v613 = vunpack.c.l.b16 %v194
    %v614 = vunpack.c.h.b16 %v194
    %v615 = vunpack.c.l.b16 %v195
    %v616 = vunpack.c.h.b16 %v195
    %v617 = vunpack.c.l.b16 %v196
    %v618 = vunpack.c.h.b16 %v196
    %v619 = vunpack.c.l.b16 %v197
    %v620 = vunpack.c.h.b16 %v197
    %v621 = vunpack.c.l.b16 %v198
    %v622 = vunpack.c.h.b16 %v198
    %v623 = vpack.c.b16 %v369, %v367
    %v624 = vpack.c.b16 %v370, %v368
    %v625 = vpack.c.b16 %v373, %v371
    %v626 = vpack.c.b16 %v374, %v372
    %v627 = vpack.c.b16 %v377, %v375
    %v628 = vpack.c.b16 %v378, %v376
    %v629 = vpack.c.b16 %v381, %v379
    %v630 = vpack.c.b16 %v382, %v380
    %v631 = vpack.c.b16 %v385, %v383
    %v632 = vpack.c.b16 %v386, %v384
    %v633 = vpack.c.b16 %v389, %v387
    %v634 = vpack.c.b16 %v390, %v388
    %v635 = vpack.c.b16 %v393, %v391
    %v636 = vpack.c.b16 %v394, %v392
    %v637 = vpack.c.b16 %v397, %v395
    %v638 = vpack.c.b16 %v398, %v396
    %v639 = vpack.c.b16 %v401, %v399
    %v640 = vpack.c.b16 %v402, %v400
    %v641 = vpack.c.b16 %v405, %v403
    %v642 = vpack.c.b16 %v406, %v404
    %v643 = vpack.c.b16 %v409, %v407
    %v644 = vpack.c.b16 %v410, %v408
    %v645 = vpack.c.b16 %v413, %v411
    %v646 = vpack.c.b16 %v414, %v412
    %v647 = vpack.c.b16 %v417, %v415
    %v648 = vpack.c.b16 %v418, %v416
    %v649 = vpack.c.b16 %v421, %v419
    %v650 = vpack.c.b16 %v422, %v420
    %v651 = vpack.c.b16 %v425, %v423
    %v652 = vpack.c.b16 %v426, %v424
    %v653 = vpack.c.b16 %v429, %v427
    %v654 = vpack.c.b16 %v430, %v428
    %v655 = vpack.c.b16 %v433, %v431
    %v656 = vpack.c.b16 %v434, %v432
    %v657 = vpack.c.b16 %v437, %v435
    %v658 = vpack.c.b16 %v438, %v436
    %v659 = vpack.c.b16 %v441, %v439
    %v660 = vpack.c.b16 %v442, %v440
    %v661 = vpack.c.b16 %v445, %v443
    %v662 = vpack.c.b16 %v446, %v444
    %v663 = vpack.c.b16 %v449, %v447
    %v664 = vpack.c.b16 %v450, %v448
    %v665 = vpack.c.b16 %v453, %v451
    %v666 = vpack.c.b16 %v454, %v452
    %v667 = vpack.c.b16 %v457, %v455
    %v668 = vpack.c.b16 %v458, %v456
    %v669 = vpack.c.b16 %v461, %v459
    %v670 = vpack.c.b16 %v462, %v460
    %v671 = vpack.c.b16 %v465, %v463
    %v672 = vpack.c.b16 %v466, %v464
    %v673 = vpack.c.b16 %v469, %v467
    %v674 = vpack.c.b16 %v470, %v468
    %v675 = vpack.c.b16 %v473, %v471
    %v676 = vpack.c.b16 %v474, %v472
    %v677 = vpack.c.b16 %v477, %v475
    %v678 = vpack.c.b16 %v478, %v476
    %v679 = vpack.c.b16 %v481, %v479
    %v680 = vpack.c.b16 %v482, %v480
    %v681 = vpack.c.b16 %v485, %v483
    %v682 = vpack.c.b16 %v486, %v484
    %v683 = vpack.c.b16 %v489, %v487
    %v684 = vpack.c.b16 %v490, %v488
    %v685 = vpack.c.b16 %v493, %v491
    %v686 = vpack.c.b16 %v494, %v492
    %v687 = vpack.c.b16 %v497, %v495
    %v688 = vpack.c.b16 %v498, %v496
    %v689 = vpack.c.b16 %v501, %v499
    %v690 = vpack.c.b16 %v502, %v500
    %v691 = vpack.c.b16 %v505, %v503
    %v692 = vpack.c.b16 %v506, %v504
    %v693 = vpack.c.b16 %v509, %v507
    %v694 = vpack.c.b16 %v510, %v508
    %v695 = vpack.c.b16 %v513, %v511
    %v696 = vpack.c.b16 %v514, %v512
    %v697 = vpack.c.b16 %v517, %v515
    %v698 = vpack.c.b16 %v518, %v516
    %v699 = vpack.c.b16 %v521, %v519
    %v700 = vpack.c.b16 %v522, %v520
    %v701 = vpack.c.b16 %v525, %v523
    %v702 = vpack.c.b16 %v526, %v524
    %v703 = vpack.c.b16 %v529, %v527
    %v704 = vpack.c.b16 %v530, %v528
    %v705 = vpack.c.b16 %v533, %v531
    %v706 = vpack.c.b16 %v534, %v532
    %v707 = vpack.c.b16 %v537, %v535
    %v708 = vpack.c.b16 %v538, %v536
    %v709 = vpack.c.b16 %v541, %v539
    %v710 = vpack.c.b16 %v542, %v540
    %v711 = vpack.c.b16 %v545, %v543
    %v712 = vpack.c.b16 %v546, %v544
    %v713 = vpack.c.b16 %v549, %v547
    %v714 = vpack.c.b16 %v550, %v548
    %v715 = vpack.c.b16 %v553, %v551
    %v716 = vpack.c.b16 %v554, %v552
    %v717 = vpack.c.b16 %v557, %v555
    %v718 = vpack.c.b16 %v558, %v556
    %v719 = vpack.c.b16 %v561, %v559
    %v720 = vpack.c.b16 %v562, %v560
    %v721 = vpack.c.b16 %v565, %v563
    %v722 = vpack.c.b16 %v566, %v564
    %v723 = vpack.c.b16 %v569, %v567
    %v724 = vpack.c.b16 %v570, %v568
    %v725 = vpack.c.b16 %v573, %v571
    %v726 = vpack.c.b16 %v574, %v572
    %v727 = vpack.c.b16 %v577, %v575
    %v728 = vpack.c.b16 %v578, %v576
    %v729 = vpack.c.b16 %v581, %v579
    %v730 = vpack.c.b16 %v582, %v580
    %v731 = vpack.c.b16 %v585, %v583
    %v732 = vpack.c.b16 %v586, %v584
    %v733 = vpack.c.b16 %v589, %v587
    %v734 = vpack.c.b16 %v590, %v588
    %v735 = vpack.c.b16 %v593, %v591
    %v736 = vpack.c.b16 %v594, %v592
    %v737 = vpack.c.b16 %v597, %v595
    %v738 = vpack.c.b16 %v598, %v596
    %v739 = vpack.c.b16 %v601, %v599
    %v740 = vpack.c.b16 %v602, %v600
    %v741 = vpack.c.b16 %v605, %v603
    %v742 = vpack.c.b16 %v606, %v604
    %v743 = vpack.c.b16 %v609, %v607
    %v744 = vpack.c.b16 %v610, %v608
    %v745 = vpack.c.b16 %v613, %v611
    %v746 = vpack.c.b16 %v614, %v612
    %v747 = vpack.c.b16 %v617, %v615
    %v748 = vpack.c.b16 %v618, %v616
    %v749 = vpack.c.b16 %v621, %v619
    %v750 = vpack.c.b16 %v622, %v620
    %879 = vmatprep.subr.bf16.mxu0 %v624
    %880 = vmatpush1.bf16.msra.mxu0 %v623
    %881 = vmatprep.subr.bf16.mxu0 %v626
    %882 = vmatpush1.bf16.msra.mxu0 %v625
    %883 = vmatprep.subr.bf16.mxu0 %v628
    %884 = vmatpush1.bf16.msra.mxu0 %v627
    %885 = vmatprep.subr.bf16.mxu0 %v630
    %886 = vmatpush1.bf16.msra.mxu0 %v629
    %887 = vmatprep.subr.bf16.mxu0 %v632
    %888 = vmatpush1.bf16.msra.mxu0 %v631
    %889 = vmatprep.subr.bf16.mxu0 %v634
    %890 = vmatpush1.bf16.msra.mxu0 %v633
    %891 = vmatprep.subr.bf16.mxu0 %v636
    %892 = vmatpush1.bf16.msra.mxu0 %v635
    %893 = vmatprep.subr.bf16.mxu0 %v638
    %894 = vmatpush1.bf16.msra.mxu0 %v637
    %895 = vmatprep.subr.bf16.mxu0 %v640
    %896 = vmatpush1.bf16.msra.mxu0 %v639
    %897 = vmatprep.subr.bf16.mxu0 %v642
    %898 = vmatpush1.bf16.msra.mxu0 %v641
    %899 = vmatprep.subr.bf16.mxu0 %v644
    %900 = vmatpush1.bf16.msra.mxu0 %v643
    %901 = vmatprep.subr.bf16.mxu0 %v646
    %902 = vmatpush1.bf16.msra.mxu0 %v645
    %903 = vmatprep.subr.bf16.mxu0 %v648
    %904 = vmatpush1.bf16.msra.mxu0 %v647
    %905 = vmatprep.subr.bf16.mxu0 %v650
    %906 = vmatpush1.bf16.msra.mxu0 %v649
    %907 = vmatprep.subr.bf16.mxu0 %v652
    %908 = vmatpush1.bf16.msra.mxu0 %v651
    %909 = vmatprep.subr.bf16.mxu0 %v654
    %910 = vmatpush1.bf16.msra.mxu0 %v653
    %911 = vmatprep.mubr.bf16.mxu0 %v224
    %912 = vmatmul.mubr.bf16.gmra.mrb[0].mxu0 %v223
    %v913 = vpop.f32.mrb[0].mxu0
    %v914 = vadd.f32 %v204, %v913
    %v915 = vpop.f32.mrb[0].mxu0
    %v916 = vadd.f32 %v208, %v915
    %v917 = vpop.f32.mrb[0].mxu0
    %v918 = vpop.f32.mrb[0].mxu0
    %919 = vdwg.mxu0
    %920 = vmatprep.subr.bf16.mxu0 %v656
    %921 = vmatpush1.bf16.msra.mxu0 %v655
    %922 = vmatprep.subr.bf16.mxu0 %v658
    %923 = vmatpush1.bf16.msra.mxu0 %v657
    %924 = vmatprep.subr.bf16.mxu0 %v660
    %925 = vmatpush1.bf16.msra.mxu0 %v659
    %926 = vmatprep.subr.bf16.mxu0 %v662
    %927 = vmatpush1.bf16.msra.mxu0 %v661
    %928 = vmatprep.subr.bf16.mxu0 %v664
    %929 = vmatpush1.bf16.msra.mxu0 %v663
    %930 = vmatprep.subr.bf16.mxu0 %v666
    %931 = vmatpush1.bf16.msra.mxu0 %v665
    %932 = vmatprep.subr.bf16.mxu0 %v668
    %933 = vmatpush1.bf16.msra.mxu0 %v667
    %934 = vmatprep.subr.bf16.mxu0 %v670
    %935 = vmatpush1.bf16.msra.mxu0 %v669
    %936 = vmatprep.subr.bf16.mxu0 %v672
    %937 = vmatpush1.bf16.msra.mxu0 %v671
    %938 = vmatprep.subr.bf16.mxu0 %v674
    %939 = vmatpush1.bf16.msra.mxu0 %v673
    %940 = vmatprep.subr.bf16.mxu0 %v676
    %941 = vmatpush1.bf16.msra.mxu0 %v675
    %942 = vmatprep.subr.bf16.mxu0 %v678
    %943 = vmatpush1.bf16.msra.mxu0 %v677
    %944 = vmatprep.subr.bf16.mxu0 %v680
    %945 = vmatpush1.bf16.msra.mxu0 %v679
    %946 = vmatprep.subr.bf16.mxu0 %v682
    %947 = vmatpush1.bf16.msra.mxu0 %v681
    %948 = vmatprep.subr.bf16.mxu0 %v684
    %949 = vmatpush1.bf16.msra.mxu0 %v683
    %950 = vmatprep.subr.bf16.mxu0 %v686
    %951 = vmatpush1.bf16.msra.mxu0 %v685
    %952 = vmatprep.mubr.bf16.mxu0 %v226
    %953 = vmatmul.mubr.bf16.gmra.mrb[0].mxu0 %v225
    %v954 = vpop.f32.mrb[0].mxu0
    %v955 = vadd.f32 %v914, %v954
    %v956 = vpop.f32.mrb[0].mxu0
    %v957 = vadd.f32 %v916, %v956
    %v958 = vpop.f32.mrb[0].mxu0
    %v959 = vpop.f32.mrb[0].mxu0
    %960 = vdwg.mxu0
    %961 = vmatprep.subr.bf16.mxu0 %v688
    %962 = vmatpush1.bf16.msra.mxu0 %v687
    %963 = vmatprep.subr.bf16.mxu0 %v690
    %964 = vmatpush1.bf16.msra.mxu0 %v689
    %965 = vmatprep.subr.bf16.mxu0 %v692
    %966 = vmatpush1.bf16.msra.mxu0 %v691
    %967 = vmatprep.subr.bf16.mxu0 %v694
    %968 = vmatpush1.bf16.msra.mxu0 %v693
    %969 = vmatprep.subr.bf16.mxu0 %v696
    %970 = vmatpush1.bf16.msra.mxu0 %v695
    %971 = vmatprep.subr.bf16.mxu0 %v698
    %972 = vmatpush1.bf16.msra.mxu0 %v697
    %973 = vmatprep.subr.bf16.mxu0 %v700
    %974 = vmatpush1.bf16.msra.mxu0 %v699
    %975 = vmatprep.subr.bf16.mxu0 %v702
    %976 = vmatpush1.bf16.msra.mxu0 %v701
    %977 = vmatprep.subr.bf16.mxu0 %v704
    %978 = vmatpush1.bf16.msra.mxu0 %v703
    %979 = vmatprep.subr.bf16.mxu0 %v706
    %980 = vmatpush1.bf16.msra.mxu0 %v705
    %981 = vmatprep.subr.bf16.mxu0 %v708
    %982 = vmatpush1.bf16.msra.mxu0 %v707
    %983 = vmatprep.subr.bf16.mxu0 %v710
    %984 = vmatpush1.bf16.msra.mxu0 %v709
    %985 = vmatprep.subr.bf16.mxu0 %v712
    %986 = vmatpush1.bf16.msra.mxu0 %v711
    %987 = vmatprep.subr.bf16.mxu0 %v714
    %988 = vmatpush1.bf16.msra.mxu0 %v713
    %989 = vmatprep.subr.bf16.mxu0 %v716
    %990 = vmatpush1.bf16.msra.mxu0 %v715
    %991 = vmatprep.subr.bf16.mxu0 %v718
    %992 = vmatpush1.bf16.msra.mxu0 %v717
    %993 = vmatprep.mubr.bf16.mxu0 %v228
    %994 = vmatmul.mubr.bf16.gmra.mrb[0].mxu0 %v227
    %v995 = vpop.f32.mrb[0].mxu0
    %v996 = vadd.f32 %v955, %v995
    %v997 = vpop.f32.mrb[0].mxu0
    %v998 = vadd.f32 %v957, %v997
    %v999 = vpop.f32.mrb[0].mxu0
    %v1000 = vpop.f32.mrb[0].mxu0
    %1001 = vdwg.mxu0
    %1002 = vmatprep.subr.bf16.mxu0 %v720
    %1003 = vmatpush1.bf16.msra.mxu0 %v719
    %1004 = vmatprep.subr.bf16.mxu0 %v722
    %1005 = vmatpush1.bf16.msra.mxu0 %v721
    %1006 = vmatprep.subr.bf16.mxu0 %v724
    %1007 = vmatpush1.bf16.msra.mxu0 %v723
    %1008 = vmatprep.subr.bf16.mxu0 %v726
    %1009 = vmatpush1.bf16.msra.mxu0 %v725
    %1010 = vmatprep.subr.bf16.mxu0 %v728
    %1011 = vmatpush1.bf16.msra.mxu0 %v727
    %1012 = vmatprep.subr.bf16.mxu0 %v730
    %1013 = vmatpush1.bf16.msra.mxu0 %v729
    %1014 = vmatprep.subr.bf16.mxu0 %v732
    %1015 = vmatpush1.bf16.msra.mxu0 %v731
    %1016 = vmatprep.subr.bf16.mxu0 %v734
    %1017 = vmatpush1.bf16.msra.mxu0 %v733
    %1018 = vmatprep.subr.bf16.mxu0 %v736
    %1019 = vmatpush1.bf16.msra.mxu0 %v735
    %1020 = vmatprep.subr.bf16.mxu0 %v738
    %1021 = vmatpush1.bf16.msra.mxu0 %v737
    %1022 = vmatprep.subr.bf16.mxu0 %v740
    %1023 = vmatpush1.bf16.msra.mxu0 %v739
    %1024 = vmatprep.subr.bf16.mxu0 %v742
    %1025 = vmatpush1.bf16.msra.mxu0 %v741
    %1026 = vmatprep.subr.bf16.mxu0 %v744
    %1027 = vmatpush1.bf16.msra.mxu0 %v743
    %1028 = vmatprep.subr.bf16.mxu0 %v746
    %1029 = vmatpush1.bf16.msra.mxu0 %v745
    %1030 = vmatprep.subr.bf16.mxu0 %v748
    %1031 = vmatpush1.bf16.msra.mxu0 %v747
    %1032 = vmatprep.subr.bf16.mxu0 %v750
    %1033 = vmatpush1.bf16.msra.mxu0 %v749
    %1034 = vmatprep.mubr.bf16.mxu0 %v230
    %1035 = vmatmul.mubr.bf16.gmra.mrb[0].mxu0 %v229
    %v1036 = vpop.f32.mrb[0].mxu0
    %v1037 = vadd.f32 %v996, %v1036
    %v1038 = vpop.f32.mrb[0].mxu0
    %v1039 = vadd.f32 %v998, %v1038
    %v1040 = vpop.f32.mrb[0].mxu0
    %v1041 = vpop.f32.mrb[0].mxu0
    %1042 = vdwg.mxu0
    %v1043 = vld [vmem:[%s4] sm:$0x3]
    %1045 = vset.pattern.permute.xlu0 0
    %1046 = vperm.xlu0 %1045, %v70
    %v1047 = vpop.permute.xlu0 %1046
    %v1050 = vlaneseq
    %v1051 = vshrl.u32 %v1050, 7
    %v1052 = vsub.s32 0, %v1051
    %v1053 = vrot.slane %v1043, %v1052
    %v1054 = vlaneseq
    %v1055 = vshrl.u32 %v1054, 7
    %v1056 = vsub.s32 1, %v1055
    %v1057 = vrot.slane %v1043, %v1056
    %v1060 = vmul.f32 %v1047, %v1053
    %v1061 = vmul.f32 %v1047, %v1057
    %v1062 = vadd.f32 %v1037, %v1060
    %v1063 = vadd.f32 %v1039, %v1061
    %v1064 = vmax.f32 %v1062, 0.0
    %v1065 = vmax.f32 %v1063, 0.0
    %v1066 = vpack.c.bf16 %v1064, %v1064
    %v1067 = vpack.c.bf16 %v1065, %v1065
    %v1068 = vld [vmem:[#allocation7] sm:$0xff]
    %v1069 = vld [vmem:[#allocation7 + $0x8] sm:$0xff]
    %v1070 = vld [vmem:[#allocation7 + $0x10] sm:$0xff]
    %v1071 = vld [vmem:[#allocation7 + $0x18] sm:$0xff]
    %v1072 = vld [vmem:[#allocation7 + $0x20] sm:$0xff]
    %v1073 = vld [vmem:[#allocation7 + $0x28] sm:$0xff]
    %v1074 = vld [vmem:[#allocation7 + $0x30] sm:$0xff]
    %v1075 = vld [vmem:[#allocation7 + $0x38] sm:$0xff]
    %v1076 = vld [vmem:[#allocation7 + $0x40] sm:$0xff]
    %v1077 = vld [vmem:[#allocation7 + $0x48] sm:$0xff]
    %v1078 = vld [vmem:[#allocation7 + $0x50] sm:$0xff]
    %v1079 = vld [vmem:[#allocation7 + $0x58] sm:$0xff]
    %v1080 = vld [vmem:[#allocation7 + $0x60] sm:$0xff]
    %v1081 = vld [vmem:[#allocation7 + $0x68] sm:$0xff]
    %v1082 = vld [vmem:[#allocation7 + $0x70] sm:$0xff]
    %v1083 = vld [vmem:[#allocation7 + $0x78] sm:$0xff]
    %v1084 = vld [vmem:[#allocation7 + $0x80] sm:$0xff]
    %v1085 = vld [vmem:[#allocation7 + $0x88] sm:$0xff]
    %v1086 = vld [vmem:[#allocation7 + $0x90] sm:$0xff]
    %v1087 = vld [vmem:[#allocation7 + $0x98] sm:$0xff]
    %v1088 = vld [vmem:[#allocation7 + $0xa0] sm:$0xff]
    %v1089 = vld [vmem:[#allocation7 + $0xa8] sm:$0xff]
    %v1090 = vld [vmem:[#allocation7 + $0xb0] sm:$0xff]
    %v1091 = vld [vmem:[#allocation7 + $0xb8] sm:$0xff]
    %v1092 = vld [vmem:[#allocation7 + $0xc0] sm:$0xff]
    %v1093 = vld [vmem:[#allocation7 + $0xc8] sm:$0xff]
    %v1094 = vld [vmem:[#allocation7 + $0xd0] sm:$0xff]
    %v1095 = vld [vmem:[#allocation7 + $0xd8] sm:$0xff]
    %v1096 = vld [vmem:[#allocation7 + $0xe0] sm:$0xff]
    %v1097 = vld [vmem:[#allocation7 + $0xe8] sm:$0xff]
    %v1098 = vld [vmem:[#allocation7 + $0xf0] sm:$0xff]
    %v1099 = vld [vmem:[#allocation7 + $0xf8] sm:$0xff]
    %v1100 = vld [vmem:[#allocation7 + $0x100] sm:$0xff]
    %v1101 = vld [vmem:[#allocation7 + $0x108] sm:$0xff]
    %v1102 = vld [vmem:[#allocation7 + $0x110] sm:$0xff]
    %v1103 = vld [vmem:[#allocation7 + $0x118] sm:$0xff]
    %v1104 = vld [vmem:[#allocation7 + $0x120] sm:$0xff]
    %v1105 = vld [vmem:[#allocation7 + $0x128] sm:$0xff]
    %v1106 = vld [vmem:[#allocation7 + $0x130] sm:$0xff]
    %v1107 = vld [vmem:[#allocation7 + $0x138] sm:$0xff]
    %v1108 = vld [vmem:[#allocation7 + $0x140] sm:$0xff]
    %v1109 = vld [vmem:[#allocation7 + $0x148] sm:$0xff]
    %v1110 = vld [vmem:[#allocation7 + $0x150] sm:$0xff]
    %v1111 = vld [vmem:[#allocation7 + $0x158] sm:$0xff]
    %v1112 = vld [vmem:[#allocation7 + $0x160] sm:$0xff]
    %v1113 = vld [vmem:[#allocation7 + $0x168] sm:$0xff]
    %v1114 = vld [vmem:[#allocation7 + $0x170] sm:$0xff]
    %v1115 = vld [vmem:[#allocation7 + $0x178] sm:$0xff]
    %v1116 = vld [vmem:[#allocation7 + $0x180] sm:$0xff]
    %v1117 = vld [vmem:[#allocation7 + $0x188] sm:$0xff]
    %v1118 = vld [vmem:[#allocation7 + $0x190] sm:$0xff]
    %v1119 = vld [vmem:[#allocation7 + $0x198] sm:$0xff]
    %v1120 = vld [vmem:[#allocation7 + $0x1a0] sm:$0xff]
    %v1121 = vld [vmem:[#allocation7 + $0x1a8] sm:$0xff]
    %v1122 = vld [vmem:[#allocation7 + $0x1b0] sm:$0xff]
    %v1123 = vld [vmem:[#allocation7 + $0x1b8] sm:$0xff]
    %v1124 = vld [vmem:[#allocation7 + $0x1c0] sm:$0xff]
    %v1125 = vld [vmem:[#allocation7 + $0x1c8] sm:$0xff]
    %v1126 = vld [vmem:[#allocation7 + $0x1d0] sm:$0xff]
    %v1127 = vld [vmem:[#allocation7 + $0x1d8] sm:$0xff]
    %v1128 = vld [vmem:[#allocation7 + $0x1e0] sm:$0xff]
    %v1129 = vld [vmem:[#allocation7 + $0x1e8] sm:$0xff]
    %v1130 = vld [vmem:[#allocation7 + $0x1f0] sm:$0xff]
    %v1131 = vld [vmem:[#allocation7 + $0x1f8] sm:$0xff]
    %v1132 = vld [vmem:[#allocation7 + $0x200] sm:$0xff]
    %v1133 = vld [vmem:[#allocation7 + $0x208] sm:$0xff]
    %v1134 = vld [vmem:[#allocation7 + $0x210] sm:$0xff]
    %v1135 = vld [vmem:[#allocation7 + $0x218] sm:$0xff]
    %v1136 = vld [vmem:[#allocation7 + $0x220] sm:$0xff]
    %v1137 = vld [vmem:[#allocation7 + $0x228] sm:$0xff]
    %v1138 = vld [vmem:[#allocation7 + $0x230] sm:$0xff]
    %v1139 = vld [vmem:[#allocation7 + $0x238] sm:$0xff]
    %v1140 = vld [vmem:[#allocation7 + $0x240] sm:$0xff]
    %v1141 = vld [vmem:[#allocation7 + $0x248] sm:$0xff]
    %v1142 = vld [vmem:[#allocation7 + $0x250] sm:$0xff]
    %v1143 = vld [vmem:[#allocation7 + $0x258] sm:$0xff]
    %v1144 = vld [vmem:[#allocation7 + $0x260] sm:$0xff]
    %v1145 = vld [vmem:[#allocation7 + $0x268] sm:$0xff]
    %v1146 = vld [vmem:[#allocation7 + $0x270] sm:$0xff]
    %v1147 = vld [vmem:[#allocation7 + $0x278] sm:$0xff]
    %v1148 = vld [vmem:[#allocation7 + $0x280] sm:$0xff]
    %v1149 = vld [vmem:[#allocation7 + $0x288] sm:$0xff]
    %v1150 = vld [vmem:[#allocation7 + $0x290] sm:$0xff]
    %v1151 = vld [vmem:[#allocation7 + $0x298] sm:$0xff]
    %v1152 = vld [vmem:[#allocation7 + $0x2a0] sm:$0xff]
    %v1153 = vld [vmem:[#allocation7 + $0x2a8] sm:$0xff]
    %v1154 = vld [vmem:[#allocation7 + $0x2b0] sm:$0xff]
    %v1155 = vld [vmem:[#allocation7 + $0x2b8] sm:$0xff]
    %v1156 = vld [vmem:[#allocation7 + $0x2c0] sm:$0xff]
    %v1157 = vld [vmem:[#allocation7 + $0x2c8] sm:$0xff]
    %v1158 = vld [vmem:[#allocation7 + $0x2d0] sm:$0xff]
    %v1159 = vld [vmem:[#allocation7 + $0x2d8] sm:$0xff]
    %v1160 = vld [vmem:[#allocation7 + $0x2e0] sm:$0xff]
    %v1161 = vld [vmem:[#allocation7 + $0x2e8] sm:$0xff]
    %v1162 = vld [vmem:[#allocation7 + $0x2f0] sm:$0xff]
    %v1163 = vld [vmem:[#allocation7 + $0x2f8] sm:$0xff]
    %v1164 = vld [vmem:[#allocation7 + $0x300] sm:$0xff]
    %v1165 = vld [vmem:[#allocation7 + $0x308] sm:$0xff]
    %v1166 = vld [vmem:[#allocation7 + $0x310] sm:$0xff]
    %v1167 = vld [vmem:[#allocation7 + $0x318] sm:$0xff]
    %v1168 = vld [vmem:[#allocation7 + $0x320] sm:$0xff]
    %v1169 = vld [vmem:[#allocation7 + $0x328] sm:$0xff]
    %v1170 = vld [vmem:[#allocation7 + $0x330] sm:$0xff]
    %v1171 = vld [vmem:[#allocation7 + $0x338] sm:$0xff]
    %v1172 = vld [vmem:[#allocation7 + $0x340] sm:$0xff]
    %v1173 = vld [vmem:[#allocation7 + $0x348] sm:$0xff]
    %v1174 = vld [vmem:[#allocation7 + $0x350] sm:$0xff]
    %v1175 = vld [vmem:[#allocation7 + $0x358] sm:$0xff]
    %v1176 = vld [vmem:[#allocation7 + $0x360] sm:$0xff]
    %v1177 = vld [vmem:[#allocation7 + $0x368] sm:$0xff]
    %v1178 = vld [vmem:[#allocation7 + $0x370] sm:$0xff]
    %v1179 = vld [vmem:[#allocation7 + $0x378] sm:$0xff]
    %v1180 = vld [vmem:[#allocation7 + $0x380] sm:$0xff]
    %v1181 = vld [vmem:[#allocation7 + $0x388] sm:$0xff]
    %v1182 = vld [vmem:[#allocation7 + $0x390] sm:$0xff]
    %v1183 = vld [vmem:[#allocation7 + $0x398] sm:$0xff]
    %v1184 = vld [vmem:[#allocation7 + $0x3a0] sm:$0xff]
    %v1185 = vld [vmem:[#allocation7 + $0x3a8] sm:$0xff]
    %v1186 = vld [vmem:[#allocation7 + $0x3b0] sm:$0xff]
    %v1187 = vld [vmem:[#allocation7 + $0x3b8] sm:$0xff]
    %v1188 = vld [vmem:[#allocation7 + $0x3c0] sm:$0xff]
    %v1189 = vld [vmem:[#allocation7 + $0x3c8] sm:$0xff]
    %v1190 = vld [vmem:[#allocation7 + $0x3d0] sm:$0xff]
    %v1191 = vld [vmem:[#allocation7 + $0x3d8] sm:$0xff]
    %v1192 = vld [vmem:[#allocation7 + $0x3e0] sm:$0xff]
    %v1193 = vld [vmem:[#allocation7 + $0x3e8] sm:$0xff]
    %v1194 = vld [vmem:[#allocation7 + $0x3f0] sm:$0xff]
    %v1195 = vld [vmem:[#allocation7 + $0x3f8] sm:$0xff]
    %v1196 = vld [vmem:[%s6] sm:$0xff]
    %v1198 = vlaneseq
    %v1199 = vshrl.u32 %v1198, 7
    %v1200 = vsub.s32 0, %v1199
    %v1201 = vrot.slane %v1196, %v1200
    %v1202 = vlaneseq
    %v1203 = vshrl.u32 %v1202, 7
    %v1204 = vsub.s32 1, %v1203
    %v1205 = vrot.slane %v1196, %v1204
    %v1206 = vlaneseq
    %v1207 = vshrl.u32 %v1206, 7
    %v1208 = vsub.s32 2, %v1207
    %v1209 = vrot.slane %v1196, %v1208
    %v1210 = vlaneseq
    %v1211 = vshrl.u32 %v1210, 7
    %v1212 = vsub.s32 3, %v1211
    %v1213 = vrot.slane %v1196, %v1212
    %v1214 = vlaneseq
    %v1215 = vshrl.u32 %v1214, 7
    %v1216 = vsub.s32 4, %v1215
    %v1217 = vrot.slane %v1196, %v1216
    %v1218 = vlaneseq
    %v1219 = vshrl.u32 %v1218, 7
    %v1220 = vsub.s32 5, %v1219
    %v1221 = vrot.slane %v1196, %v1220
    %v1222 = vlaneseq
    %v1223 = vshrl.u32 %v1222, 7
    %v1224 = vsub.s32 6, %v1223
    %v1225 = vrot.slane %v1196, %v1224
    %v1226 = vlaneseq
    %v1227 = vshrl.u32 %v1226, 7
    %v1228 = vsub.s32 7, %v1227
    %v1229 = vrot.slane %v1196, %v1228
    %v1366 = vunpack.c.l.b16 %v1068
    %v1367 = vunpack.c.h.b16 %v1068
    %v1368 = vunpack.c.l.b16 %v1069
    %v1369 = vunpack.c.h.b16 %v1069
    %v1370 = vunpack.c.l.b16 %v1070
    %v1371 = vunpack.c.h.b16 %v1070
    %v1372 = vunpack.c.l.b16 %v1071
    %v1373 = vunpack.c.h.b16 %v1071
    %v1374 = vunpack.c.l.b16 %v1072
    %v1375 = vunpack.c.h.b16 %v1072
    %v1376 = vunpack.c.l.b16 %v1073
    %v1377 = vunpack.c.h.b16 %v1073
    %v1378 = vunpack.c.l.b16 %v1074
    %v1379 = vunpack.c.h.b16 %v1074
    %v1380 = vunpack.c.l.b16 %v1075
    %v1381 = vunpack.c.h.b16 %v1075
    %v1382 = vunpack.c.l.b16 %v1076
    %v1383 = vunpack.c.h.b16 %v1076
    %v1384 = vunpack.c.l.b16 %v1077
    %v1385 = vunpack.c.h.b16 %v1077
    %v1386 = vunpack.c.l.b16 %v1078
    %v1387 = vunpack.c.h.b16 %v1078
    %v1388 = vunpack.c.l.b16 %v1079
    %v1389 = vunpack.c.h.b16 %v1079
    %v1390 = vunpack.c.l.b16 %v1080
    %v1391 = vunpack.c.h.b16 %v1080
    %v1392 = vunpack.c.l.b16 %v1081
    %v1393 = vunpack.c.h.b16 %v1081
    %v1394 = vunpack.c.l.b16 %v1082
    %v1395 = vunpack.c.h.b16 %v1082
    %v1396 = vunpack.c.l.b16 %v1083
    %v1397 = vunpack.c.h.b16 %v1083
    %v1398 = vunpack.c.l.b16 %v1084
    %v1399 = vunpack.c.h.b16 %v1084
    %v1400 = vunpack.c.l.b16 %v1085
    %v1401 = vunpack.c.h.b16 %v1085
    %v1402 = vunpack.c.l.b16 %v1086
    %v1403 = vunpack.c.h.b16 %v1086
    %v1404 = vunpack.c.l.b16 %v1087
    %v1405 = vunpack.c.h.b16 %v1087
    %v1406 = vunpack.c.l.b16 %v1088
    %v1407 = vunpack.c.h.b16 %v1088
    %v1408 = vunpack.c.l.b16 %v1089
    %v1409 = vunpack.c.h.b16 %v1089
    %v1410 = vunpack.c.l.b16 %v1090
    %v1411 = vunpack.c.h.b16 %v1090
    %v1412 = vunpack.c.l.b16 %v1091
    %v1413 = vunpack.c.h.b16 %v1091
    %v1414 = vunpack.c.l.b16 %v1092
    %v1415 = vunpack.c.h.b16 %v1092
    %v1416 = vunpack.c.l.b16 %v1093
    %v1417 = vunpack.c.h.b16 %v1093
    %v1418 = vunpack.c.l.b16 %v1094
    %v1419 = vunpack.c.h.b16 %v1094
    %v1420 = vunpack.c.l.b16 %v1095
    %v1421 = vunpack.c.h.b16 %v1095
    %v1422 = vunpack.c.l.b16 %v1096
    %v1423 = vunpack.c.h.b16 %v1096
    %v1424 = vunpack.c.l.b16 %v1097
    %v1425 = vunpack.c.h.b16 %v1097
    %v1426 = vunpack.c.l.b16 %v1098
    %v1427 = vunpack.c.h.b16 %v1098
    %v1428 = vunpack.c.l.b16 %v1099
    %v1429 = vunpack.c.h.b16 %v1099
    %v1430 = vunpack.c.l.b16 %v1100
    %v1431 = vunpack.c.h.b16 %v1100
    %v1432 = vunpack.c.l.b16 %v1101
    %v1433 = vunpack.c.h.b16 %v1101
    %v1434 = vunpack.c.l.b16 %v1102
    %v1435 = vunpack.c.h.b16 %v1102
    %v1436 = vunpack.c.l.b16 %v1103
    %v1437 = vunpack.c.h.b16 %v1103
    %v1438 = vunpack.c.l.b16 %v1104
    %v1439 = vunpack.c.h.b16 %v1104
    %v1440 = vunpack.c.l.b16 %v1105
    %v1441 = vunpack.c.h.b16 %v1105
    %v1442 = vunpack.c.l.b16 %v1106
    %v1443 = vunpack.c.h.b16 %v1106
    %v1444 = vunpack.c.l.b16 %v1107
    %v1445 = vunpack.c.h.b16 %v1107
    %v1446 = vunpack.c.l.b16 %v1108
    %v1447 = vunpack.c.h.b16 %v1108
    %v1448 = vunpack.c.l.b16 %v1109
    %v1449 = vunpack.c.h.b16 %v1109
    %v1450 = vunpack.c.l.b16 %v1110
    %v1451 = vunpack.c.h.b16 %v1110
    %v1452 = vunpack.c.l.b16 %v1111
    %v1453 = vunpack.c.h.b16 %v1111
    %v1454 = vunpack.c.l.b16 %v1112
    %v1455 = vunpack.c.h.b16 %v1112
    %v1456 = vunpack.c.l.b16 %v1113
    %v1457 = vunpack.c.h.b16 %v1113
    %v1458 = vunpack.c.l.b16 %v1114
    %v1459 = vunpack.c.h.b16 %v1114
    %v1460 = vunpack.c.l.b16 %v1115
    %v1461 = vunpack.c.h.b16 %v1115
    %v1462 = vunpack.c.l.b16 %v1116
    %v1463 = vunpack.c.h.b16 %v1116
    %v1464 = vunpack.c.l.b16 %v1117
    %v1465 = vunpack.c.h.b16 %v1117
    %v1466 = vunpack.c.l.b16 %v1118
    %v1467 = vunpack.c.h.b16 %v1118
    %v1468 = vunpack.c.l.b16 %v1119
    %v1469 = vunpack.c.h.b16 %v1119
    %v1470 = vunpack.c.l.b16 %v1120
    %v1471 = vunpack.c.h.b16 %v1120
    %v1472 = vunpack.c.l.b16 %v1121
    %v1473 = vunpack.c.h.b16 %v1121
    %v1474 = vunpack.c.l.b16 %v1122
    %v1475 = vunpack.c.h.b16 %v1122
    %v1476 = vunpack.c.l.b16 %v1123
    %v1477 = vunpack.c.h.b16 %v1123
    %v1478 = vunpack.c.l.b16 %v1124
    %v1479 = vunpack.c.h.b16 %v1124
    %v1480 = vunpack.c.l.b16 %v1125
    %v1481 = vunpack.c.h.b16 %v1125
    %v1482 = vunpack.c.l.b16 %v1126
    %v1483 = vunpack.c.h.b16 %v1126
    %v1484 = vunpack.c.l.b16 %v1127
    %v1485 = vunpack.c.h.b16 %v1127
    %v1486 = vunpack.c.l.b16 %v1128
    %v1487 = vunpack.c.h.b16 %v1128
    %v1488 = vunpack.c.l.b16 %v1129
    %v1489 = vunpack.c.h.b16 %v1129
    %v1490 = vunpack.c.l.b16 %v1130
    %v1491 = vunpack.c.h.b16 %v1130
    %v1492 = vunpack.c.l.b16 %v1131
    %v1493 = vunpack.c.h.b16 %v1131
    %v1494 = vunpack.c.l.b16 %v1132
    %v1495 = vunpack.c.h.b16 %v1132
    %v1496 = vunpack.c.l.b16 %v1133
    %v1497 = vunpack.c.h.b16 %v1133
    %v1498 = vunpack.c.l.b16 %v1134
    %v1499 = vunpack.c.h.b16 %v1134
    %v1500 = vunpack.c.l.b16 %v1135
    %v1501 = vunpack.c.h.b16 %v1135
    %v1502 = vunpack.c.l.b16 %v1136
    %v1503 = vunpack.c.h.b16 %v1136
    %v1504 = vunpack.c.l.b16 %v1137
    %v1505 = vunpack.c.h.b16 %v1137
    %v1506 = vunpack.c.l.b16 %v1138
    %v1507 = vunpack.c.h.b16 %v1138
    %v1508 = vunpack.c.l.b16 %v1139
    %v1509 = vunpack.c.h.b16 %v1139
    %v1510 = vunpack.c.l.b16 %v1140
    %v1511 = vunpack.c.h.b16 %v1140
    %v1512 = vunpack.c.l.b16 %v1141
    %v1513 = vunpack.c.h.b16 %v1141
    %v1514 = vunpack.c.l.b16 %v1142
    %v1515 = vunpack.c.h.b16 %v1142
    %v1516 = vunpack.c.l.b16 %v1143
    %v1517 = vunpack.c.h.b16 %v1143
    %v1518 = vunpack.c.l.b16 %v1144
    %v1519 = vunpack.c.h.b16 %v1144
    %v1520 = vunpack.c.l.b16 %v1145
    %v1521 = vunpack.c.h.b16 %v1145
    %v1522 = vunpack.c.l.b16 %v1146
    %v1523 = vunpack.c.h.b16 %v1146
    %v1524 = vunpack.c.l.b16 %v1147
    %v1525 = vunpack.c.h.b16 %v1147
    %v1526 = vunpack.c.l.b16 %v1148
    %v1527 = vunpack.c.h.b16 %v1148
    %v1528 = vunpack.c.l.b16 %v1149
    %v1529 = vunpack.c.h.b16 %v1149
    %v1530 = vunpack.c.l.b16 %v1150
    %v1531 = vunpack.c.h.b16 %v1150
    %v1532 = vunpack.c.l.b16 %v1151
    %v1533 = vunpack.c.h.b16 %v1151
    %v1534 = vunpack.c.l.b16 %v1152
    %v1535 = vunpack.c.h.b16 %v1152
    %v1536 = vunpack.c.l.b16 %v1153
    %v1537 = vunpack.c.h.b16 %v1153
    %v1538 = vunpack.c.l.b16 %v1154
    %v1539 = vunpack.c.h.b16 %v1154
    %v1540 = vunpack.c.l.b16 %v1155
    %v1541 = vunpack.c.h.b16 %v1155
    %v1542 = vunpack.c.l.b16 %v1156
    %v1543 = vunpack.c.h.b16 %v1156
    %v1544 = vunpack.c.l.b16 %v1157
    %v1545 = vunpack.c.h.b16 %v1157
    %v1546 = vunpack.c.l.b16 %v1158
    %v1547 = vunpack.c.h.b16 %v1158
    %v1548 = vunpack.c.l.b16 %v1159
    %v1549 = vunpack.c.h.b16 %v1159
    %v1550 = vunpack.c.l.b16 %v1160
    %v1551 = vunpack.c.h.b16 %v1160
    %v1552 = vunpack.c.l.b16 %v1161
    %v1553 = vunpack.c.h.b16 %v1161
    %v1554 = vunpack.c.l.b16 %v1162
    %v1555 = vunpack.c.h.b16 %v1162
    %v1556 = vunpack.c.l.b16 %v1163
    %v1557 = vunpack.c.h.b16 %v1163
    %v1558 = vunpack.c.l.b16 %v1164
    %v1559 = vunpack.c.h.b16 %v1164
    %v1560 = vunpack.c.l.b16 %v1165
    %v1561 = vunpack.c.h.b16 %v1165
    %v1562 = vunpack.c.l.b16 %v1166
    %v1563 = vunpack.c.h.b16 %v1166
    %v1564 = vunpack.c.l.b16 %v1167
    %v1565 = vunpack.c.h.b16 %v1167
    %v1566 = vunpack.c.l.b16 %v1168
    %v1567 = vunpack.c.h.b16 %v1168
    %v1568 = vunpack.c.l.b16 %v1169
    %v1569 = vunpack.c.h.b16 %v1169
    %v1570 = vunpack.c.l.b16 %v1170
    %v1571 = vunpack.c.h.b16 %v1170
    %v1572 = vunpack.c.l.b16 %v1171
    %v1573 = vunpack.c.h.b16 %v1171
    %v1574 = vunpack.c.l.b16 %v1172
    %v1575 = vunpack.c.h.b16 %v1172
    %v1576 = vunpack.c.l.b16 %v1173
    %v1577 = vunpack.c.h.b16 %v1173
    %v1578 = vunpack.c.l.b16 %v1174
    %v1579 = vunpack.c.h.b16 %v1174
    %v1580 = vunpack.c.l.b16 %v1175
    %v1581 = vunpack.c.h.b16 %v1175
    %v1582 = vunpack.c.l.b16 %v1176
    %v1583 = vunpack.c.h.b16 %v1176
    %v1584 = vunpack.c.l.b16 %v1177
    %v1585 = vunpack.c.h.b16 %v1177
    %v1586 = vunpack.c.l.b16 %v1178
    %v1587 = vunpack.c.h.b16 %v1178
    %v1588 = vunpack.c.l.b16 %v1179
    %v1589 = vunpack.c.h.b16 %v1179
    %v1590 = vunpack.c.l.b16 %v1180
    %v1591 = vunpack.c.h.b16 %v1180
    %v1592 = vunpack.c.l.b16 %v1181
    %v1593 = vunpack.c.h.b16 %v1181
    %v1594 = vunpack.c.l.b16 %v1182
    %v1595 = vunpack.c.h.b16 %v1182
    %v1596 = vunpack.c.l.b16 %v1183
    %v1597 = vunpack.c.h.b16 %v1183
    %v1598 = vunpack.c.l.b16 %v1184
    %v1599 = vunpack.c.h.b16 %v1184
    %v1600 = vunpack.c.l.b16 %v1185
    %v1601 = vunpack.c.h.b16 %v1185
    %v1602 = vunpack.c.l.b16 %v1186
    %v1603 = vunpack.c.h.b16 %v1186
    %v1604 = vunpack.c.l.b16 %v1187
    %v1605 = vunpack.c.h.b16 %v1187
    %v1606 = vunpack.c.l.b16 %v1188
    %v1607 = vunpack.c.h.b16 %v1188
    %v1608 = vunpack.c.l.b16 %v1189
    %v1609 = vunpack.c.h.b16 %v1189
    %v1610 = vunpack.c.l.b16 %v1190
    %v1611 = vunpack.c.h.b16 %v1190
    %v1612 = vunpack.c.l.b16 %v1191
    %v1613 = vunpack.c.h.b16 %v1191
    %v1614 = vunpack.c.l.b16 %v1192
    %v1615 = vunpack.c.h.b16 %v1192
    %v1616 = vunpack.c.l.b16 %v1193
    %v1617 = vunpack.c.h.b16 %v1193
    %v1618 = vunpack.c.l.b16 %v1194
    %v1619 = vunpack.c.h.b16 %v1194
    %v1620 = vunpack.c.l.b16 %v1195
    %v1621 = vunpack.c.h.b16 %v1195
    %v1622 = vpack.c.b16 %v1374, %v1366
    %v1623 = vpack.c.b16 %v1375, %v1367
    %v1624 = vpack.c.b16 %v1376, %v1368
    %v1625 = vpack.c.b16 %v1377, %v1369
    %v1626 = vpack.c.b16 %v1378, %v1370
    %v1627 = vpack.c.b16 %v1379, %v1371
    %v1628 = vpack.c.b16 %v1380, %v1372
    %v1629 = vpack.c.b16 %v1381, %v1373
    %v1630 = vpack.c.b16 %v1390, %v1382
    %v1631 = vpack.c.b16 %v1391, %v1383
    %v1632 = vpack.c.b16 %v1392, %v1384
    %v1633 = vpack.c.b16 %v1393, %v1385
    %v1634 = vpack.c.b16 %v1394, %v1386
    %v1635 = vpack.c.b16 %v1395, %v1387
    %v1636 = vpack.c.b16 %v1396, %v1388
    %v1637 = vpack.c.b16 %v1397, %v1389
    %v1638 = vpack.c.b16 %v1406, %v1398
    %v1639 = vpack.c.b16 %v1407, %v1399
    %v1640 = vpack.c.b16 %v1408, %v1400
    %v1641 = vpack.c.b16 %v1409, %v1401
    %v1642 = vpack.c.b16 %v1410, %v1402
    %v1643 = vpack.c.b16 %v1411, %v1403
    %v1644 = vpack.c.b16 %v1412, %v1404
    %v1645 = vpack.c.b16 %v1413, %v1405
    %v1646 = vpack.c.b16 %v1422, %v1414
    %v1647 = vpack.c.b16 %v1423, %v1415
    %v1648 = vpack.c.b16 %v1424, %v1416
    %v1649 = vpack.c.b16 %v1425, %v1417
    %v1650 = vpack.c.b16 %v1426, %v1418
    %v1651 = vpack.c.b16 %v1427, %v1419
    %v1652 = vpack.c.b16 %v1428, %v1420
    %v1653 = vpack.c.b16 %v1429, %v1421
    %v1654 = vpack.c.b16 %v1438, %v1430
    %v1655 = vpack.c.b16 %v1439, %v1431
    %v1656 = vpack.c.b16 %v1440, %v1432
    %v1657 = vpack.c.b16 %v1441, %v1433
    %v1658 = vpack.c.b16 %v1442, %v1434
    %v1659 = vpack.c.b16 %v1443, %v1435
    %v1660 = vpack.c.b16 %v1444, %v1436
    %v1661 = vpack.c.b16 %v1445, %v1437
    %v1662 = vpack.c.b16 %v1454, %v1446
    %v1663 = vpack.c.b16 %v1455, %v1447
    %v1664 = vpack.c.b16 %v1456, %v1448
    %v1665 = vpack.c.b16 %v1457, %v1449
    %v1666 = vpack.c.b16 %v1458, %v1450
    %v1667 = vpack.c.b16 %v1459, %v1451
    %v1668 = vpack.c.b16 %v1460, %v1452
    %v1669 = vpack.c.b16 %v1461, %v1453
    %v1670 = vpack.c.b16 %v1470, %v1462
    %v1671 = vpack.c.b16 %v1471, %v1463
    %v1672 = vpack.c.b16 %v1472, %v1464
    %v1673 = vpack.c.b16 %v1473, %v1465
    %v1674 = vpack.c.b16 %v1474, %v1466
    %v1675 = vpack.c.b16 %v1475, %v1467
    %v1676 = vpack.c.b16 %v1476, %v1468
    %v1677 = vpack.c.b16 %v1477, %v1469
    %v1678 = vpack.c.b16 %v1486, %v1478
    %v1679 = vpack.c.b16 %v1487, %v1479
    %v1680 = vpack.c.b16 %v1488, %v1480
    %v1681 = vpack.c.b16 %v1489, %v1481
    %v1682 = vpack.c.b16 %v1490, %v1482
    %v1683 = vpack.c.b16 %v1491, %v1483
    %v1684 = vpack.c.b16 %v1492, %v1484
    %v1685 = vpack.c.b16 %v1493, %v1485
    %v1686 = vpack.c.b16 %v1502, %v1494
    %v1687 = vpack.c.b16 %v1503, %v1495
    %v1688 = vpack.c.b16 %v1504, %v1496
    %v1689 = vpack.c.b16 %v1505, %v1497
    %v1690 = vpack.c.b16 %v1506, %v1498
    %v1691 = vpack.c.b16 %v1507, %v1499
    %v1692 = vpack.c.b16 %v1508, %v1500
    %v1693 = vpack.c.b16 %v1509, %v1501
    %v1694 = vpack.c.b16 %v1518, %v1510
    %v1695 = vpack.c.b16 %v1519, %v1511
    %v1696 = vpack.c.b16 %v1520, %v1512
    %v1697 = vpack.c.b16 %v1521, %v1513
    %v1698 = vpack.c.b16 %v1522, %v1514
    %v1699 = vpack.c.b16 %v1523, %v1515
    %v1700 = vpack.c.b16 %v1524, %v1516
    %v1701 = vpack.c.b16 %v1525, %v1517
    %v1702 = vpack.c.b16 %v1534, %v1526
    %v1703 = vpack.c.b16 %v1535, %v1527
    %v1704 = vpack.c.b16 %v1536, %v1528
    %v1705 = vpack.c.b16 %v1537, %v1529
    %v1706 = vpack.c.b16 %v1538, %v1530
    %v1707 = vpack.c.b16 %v1539, %v1531
    %v1708 = vpack.c.b16 %v1540, %v1532
    %v1709 = vpack.c.b16 %v1541, %v1533
    %v1710 = vpack.c.b16 %v1550, %v1542
    %v1711 = vpack.c.b16 %v1551, %v1543
    %v1712 = vpack.c.b16 %v1552, %v1544
    %v1713 = vpack.c.b16 %v1553, %v1545
    %v1714 = vpack.c.b16 %v1554, %v1546
    %v1715 = vpack.c.b16 %v1555, %v1547
    %v1716 = vpack.c.b16 %v1556, %v1548
    %v1717 = vpack.c.b16 %v1557, %v1549
    %v1718 = vpack.c.b16 %v1566, %v1558
    %v1719 = vpack.c.b16 %v1567, %v1559
    %v1720 = vpack.c.b16 %v1568, %v1560
    %v1721 = vpack.c.b16 %v1569, %v1561
    %v1722 = vpack.c.b16 %v1570, %v1562
    %v1723 = vpack.c.b16 %v1571, %v1563
    %v1724 = vpack.c.b16 %v1572, %v1564
    %v1725 = vpack.c.b16 %v1573, %v1565
    %v1726 = vpack.c.b16 %v1582, %v1574
    %v1727 = vpack.c.b16 %v1583, %v1575
    %v1728 = vpack.c.b16 %v1584, %v1576
    %v1729 = vpack.c.b16 %v1585, %v1577
    %v1730 = vpack.c.b16 %v1586, %v1578
    %v1731 = vpack.c.b16 %v1587, %v1579
    %v1732 = vpack.c.b16 %v1588, %v1580
    %v1733 = vpack.c.b16 %v1589, %v1581
    %v1734 = vpack.c.b16 %v1598, %v1590
    %v1735 = vpack.c.b16 %v1599, %v1591
    %v1736 = vpack.c.b16 %v1600, %v1592
    %v1737 = vpack.c.b16 %v1601, %v1593
    %v1738 = vpack.c.b16 %v1602, %v1594
    %v1739 = vpack.c.b16 %v1603, %v1595
    %v1740 = vpack.c.b16 %v1604, %v1596
    %v1741 = vpack.c.b16 %v1605, %v1597
    %v1742 = vpack.c.b16 %v1614, %v1606
    %v1743 = vpack.c.b16 %v1615, %v1607
    %v1744 = vpack.c.b16 %v1616, %v1608
    %v1745 = vpack.c.b16 %v1617, %v1609
    %v1746 = vpack.c.b16 %v1618, %v1610
    %v1747 = vpack.c.b16 %v1619, %v1611
    %v1748 = vpack.c.b16 %v1620, %v1612
    %v1749 = vpack.c.b16 %v1621, %v1613
    %1878 = vmatprep.subr.bf16.mxu0 %v1623
    %1879 = vmatpush1.bf16.msra.mxu0 %v1622
    %1880 = vmatprep.subr.bf16.mxu0 %v1631
    %1881 = vmatpush1.bf16.msra.mxu0 %v1630
    %1882 = vmatprep.subr.bf16.mxu0 %v1639
    %1883 = vmatpush1.bf16.msra.mxu0 %v1638
    %1884 = vmatprep.subr.bf16.mxu0 %v1647
    %1885 = vmatpush1.bf16.msra.mxu0 %v1646
    %1886 = vmatprep.subr.bf16.mxu0 %v1655
    %1887 = vmatpush1.bf16.msra.mxu0 %v1654
    %1888 = vmatprep.subr.bf16.mxu0 %v1663
    %1889 = vmatpush1.bf16.msra.mxu0 %v1662
    %1890 = vmatprep.subr.bf16.mxu0 %v1671
    %1891 = vmatpush1.bf16.msra.mxu0 %v1670
    %1892 = vmatprep.subr.bf16.mxu0 %v1679
    %1893 = vmatpush1.bf16.msra.mxu0 %v1678
    %1894 = vmatprep.subr.bf16.mxu0 %v1687
    %1895 = vmatpush1.bf16.msra.mxu0 %v1686
    %1896 = vmatprep.subr.bf16.mxu0 %v1695
    %1897 = vmatpush1.bf16.msra.mxu0 %v1694
    %1898 = vmatprep.subr.bf16.mxu0 %v1703
    %1899 = vmatpush1.bf16.msra.mxu0 %v1702
    %1900 = vmatprep.subr.bf16.mxu0 %v1711
    %1901 = vmatpush1.bf16.msra.mxu0 %v1710
    %1902 = vmatprep.subr.bf16.mxu0 %v1719
    %1903 = vmatpush1.bf16.msra.mxu0 %v1718
    %1904 = vmatprep.subr.bf16.mxu0 %v1727
    %1905 = vmatpush1.bf16.msra.mxu0 %v1726
    %1906 = vmatprep.subr.bf16.mxu0 %v1735
    %1907 = vmatpush1.bf16.msra.mxu0 %v1734
    %1908 = vmatprep.subr.bf16.mxu0 %v1743
    %1909 = vmatpush1.bf16.msra.mxu0 %v1742
    %1910 = vmatprep.mubr.bf16.mxu0 %v1067
    %1911 = vmatmul.mubr.bf16.gmra.mrb[0].mxu0 %v1066
    %v1912 = vpop.f32.mrb[0].mxu0
    %v1913 = vadd.f32 %v1201, %v1912
    %v1914 = vpop.f32.mrb[0].mxu0
    %v1915 = vadd.f32 %v1205, %v1914
    %v1916 = vpop.f32.mrb[0].mxu0
    %v1917 = vpop.f32.mrb[0].mxu0
    %1918 = vdwg.mxu0
    %1919 = vmatprep.subr.bf16.mxu0 %v1625
    %1920 = vmatpush1.bf16.msra.mxu0 %v1624
    %1921 = vmatprep.subr.bf16.mxu0 %v1633
    %1922 = vmatpush1.bf16.msra.mxu0 %v1632
    %1923 = vmatprep.subr.bf16.mxu0 %v1641
    %1924 = vmatpush1.bf16.msra.mxu0 %v1640
    %1925 = vmatprep.subr.bf16.mxu0 %v1649
    %1926 = vmatpush1.bf16.msra.mxu0 %v1648
    %1927 = vmatprep.subr.bf16.mxu0 %v1657
    %1928 = vmatpush1.bf16.msra.mxu0 %v1656
    %1929 = vmatprep.subr.bf16.mxu0 %v1665
    %1930 = vmatpush1.bf16.msra.mxu0 %v1664
    %1931 = vmatprep.subr.bf16.mxu0 %v1673
    %1932 = vmatpush1.bf16.msra.mxu0 %v1672
    %1933 = vmatprep.subr.bf16.mxu0 %v1681
    %1934 = vmatpush1.bf16.msra.mxu0 %v1680
    %1935 = vmatprep.subr.bf16.mxu0 %v1689
    %1936 = vmatpush1.bf16.msra.mxu0 %v1688
    %1937 = vmatprep.subr.bf16.mxu0 %v1697
    %1938 = vmatpush1.bf16.msra.mxu0 %v1696
    %1939 = vmatprep.subr.bf16.mxu0 %v1705
    %1940 = vmatpush1.bf16.msra.mxu0 %v1704
    %1941 = vmatprep.subr.bf16.mxu0 %v1713
    %1942 = vmatpush1.bf16.msra.mxu0 %v1712
    %1943 = vmatprep.subr.bf16.mxu0 %v1721
    %1944 = vmatpush1.bf16.msra.mxu0 %v1720
    %1945 = vmatprep.subr.bf16.mxu0 %v1729
    %1946 = vmatpush1.bf16.msra.mxu0 %v1728
    %1947 = vmatprep.subr.bf16.mxu0 %v1737
    %1948 = vmatpush1.bf16.msra.mxu0 %v1736
    %1949 = vmatprep.subr.bf16.mxu0 %v1745
    %1950 = vmatpush1.bf16.msra.mxu0 %v1744
    %1951 = vmatprep.mubr.bf16.mxu0 %v1067
    %1952 = vmatmul.mubr.bf16.gmra.mrb[0].mxu0 %v1066
    %v1953 = vpop.f32.mrb[0].mxu0
    %v1954 = vadd.f32 %v1209, %v1953
    %v1955 = vpop.f32.mrb[0].mxu0
    %v1956 = vadd.f32 %v1213, %v1955
    %v1957 = vpop.f32.mrb[0].mxu0
    %v1958 = vpop.f32.mrb[0].mxu0
    %1959 = vdwg.mxu0
    %1960 = vmatprep.subr.bf16.mxu0 %v1627
    %1961 = vmatpush1.bf16.msra.mxu0 %v1626
    %1962 = vmatprep.subr.bf16.mxu0 %v1635
    %1963 = vmatpush1.bf16.msra.mxu0 %v1634
    %1964 = vmatprep.subr.bf16.mxu0 %v1643
    %1965 = vmatpush1.bf16.msra.mxu0 %v1642
    %1966 = vmatprep.subr.bf16.mxu0 %v1651
    %1967 = vmatpush1.bf16.msra.mxu0 %v1650
    %1968 = vmatprep.subr.bf16.mxu0 %v1659
    %1969 = vmatpush1.bf16.msra.mxu0 %v1658
    %1970 = vmatprep.subr.bf16.mxu0 %v1667
    %1971 = vmatpush1.bf16.msra.mxu0 %v1666
    %1972 = vmatprep.subr.bf16.mxu0 %v1675
    %1973 = vmatpush1.bf16.msra.mxu0 %v1674
    %1974 = vmatprep.subr.bf16.mxu0 %v1683
    %1975 = vmatpush1.bf16.msra.mxu0 %v1682
    %1976 = vmatprep.subr.bf16.mxu0 %v1691
    %1977 = vmatpush1.bf16.msra.mxu0 %v1690
    %1978 = vmatprep.subr.bf16.mxu0 %v1699
    %1979 = vmatpush1.bf16.msra.mxu0 %v1698
    %1980 = vmatprep.subr.bf16.mxu0 %v1707
    %1981 = vmatpush1.bf16.msra.mxu0 %v1706
    %1982 = vmatprep.subr.bf16.mxu0 %v1715
    %1983 = vmatpush1.bf16.msra.mxu0 %v1714
    %1984 = vmatprep.subr.bf16.mxu0 %v1723
    %1985 = vmatpush1.bf16.msra.mxu0 %v1722
    %1986 = vmatprep.subr.bf16.mxu0 %v1731
    %1987 = vmatpush1.bf16.msra.mxu0 %v1730
    %1988 = vmatprep.subr.bf16.mxu0 %v1739
    %1989 = vmatpush1.bf16.msra.mxu0 %v1738
    %1990 = vmatprep.subr.bf16.mxu0 %v1747
    %1991 = vmatpush1.bf16.msra.mxu0 %v1746
    %1992 = vmatprep.mubr.bf16.mxu0 %v1067
    %1993 = vmatmul.mubr.bf16.gmra.mrb[0].mxu0 %v1066
    %v1994 = vpop.f32.mrb[0].mxu0
    %v1995 = vadd.f32 %v1217, %v1994
    %v1996 = vpop.f32.mrb[0].mxu0
    %v1997 = vadd.f32 %v1221, %v1996
    %v1998 = vpop.f32.mrb[0].mxu0
    %v1999 = vpop.f32.mrb[0].mxu0
    %2000 = vdwg.mxu0
    %2001 = vmatprep.subr.bf16.mxu0 %v1629
    %2002 = vmatpush1.bf16.msra.mxu0 %v1628
    %2003 = vmatprep.subr.bf16.mxu0 %v1637
    %2004 = vmatpush1.bf16.msra.mxu0 %v1636
    %2005 = vmatprep.subr.bf16.mxu0 %v1645
    %2006 = vmatpush1.bf16.msra.mxu0 %v1644
    %2007 = vmatprep.subr.bf16.mxu0 %v1653
    %2008 = vmatpush1.bf16.msra.mxu0 %v1652
    %2009 = vmatprep.subr.bf16.mxu0 %v1661
    %2010 = vmatpush1.bf16.msra.mxu0 %v1660
    %2011 = vmatprep.subr.bf16.mxu0 %v1669
    %2012 = vmatpush1.bf16.msra.mxu0 %v1668
    %2013 = vmatprep.subr.bf16.mxu0 %v1677
    %2014 = vmatpush1.bf16.msra.mxu0 %v1676
    %2015 = vmatprep.subr.bf16.mxu0 %v1685
    %2016 = vmatpush1.bf16.msra.mxu0 %v1684
    %2017 = vmatprep.subr.bf16.mxu0 %v1693
    %2018 = vmatpush1.bf16.msra.mxu0 %v1692
    %2019 = vmatprep.subr.bf16.mxu0 %v1701
    %2020 = vmatpush1.bf16.msra.mxu0 %v1700
    %2021 = vmatprep.subr.bf16.mxu0 %v1709
    %2022 = vmatpush1.bf16.msra.mxu0 %v1708
    %2023 = vmatprep.subr.bf16.mxu0 %v1717
    %2024 = vmatpush1.bf16.msra.mxu0 %v1716
    %2025 = vmatprep.subr.bf16.mxu0 %v1725
    %2026 = vmatpush1.bf16.msra.mxu0 %v1724
    %2027 = vmatprep.subr.bf16.mxu0 %v1733
    %2028 = vmatpush1.bf16.msra.mxu0 %v1732
    %2029 = vmatprep.subr.bf16.mxu0 %v1741
    %2030 = vmatpush1.bf16.msra.mxu0 %v1740
    %2031 = vmatprep.subr.bf16.mxu0 %v1749
    %2032 = vmatpush1.bf16.msra.mxu0 %v1748
    %2033 = vmatprep.mubr.bf16.mxu0 %v1067
    %2034 = vmatmul.mubr.bf16.gmra.mrb[0].mxu0 %v1066
    %v2035 = vpop.f32.mrb[0].mxu0
    %v2036 = vadd.f32 %v1225, %v2035
    %v2037 = vpop.f32.mrb[0].mxu0
    %v2038 = vadd.f32 %v1229, %v2037
    %v2039 = vpop.f32.mrb[0].mxu0
    %v2040 = vpop.f32.mrb[0].mxu0
    %2041 = vdwg.mxu0
    %v2042 = vmul.f32 %v70, 4.6051702
    %v2043 = vmul.f32 %v2042, 1.442695
    %v2044 = vpow.pop %v2043
    %v2045 = vmul.f32 %v2044, 0.01
    %v2046 = vmul.f32 %v2045, 3.0348542
    %2048 = vset.pattern.permute.xlu0 0
    %2049 = vperm.xlu0 %2048, %v2046
    %v2050 = vpop.permute.xlu0 %2049
    %v2052 = vmul.f32 %v1913, %v2050
    %v2053 = vmul.f32 %v1915, %v2050
    %v2054 = vmul.f32 %v1954, %v2050
    %v2055 = vmul.f32 %v1956, %v2050
    %v2056 = vmul.f32 %v1995, %v2050
    %v2057 = vmul.f32 %v1997, %v2050
    %v2058 = vmul.f32 %v2036, %v2050
    %v2059 = vmul.f32 %v2038, %v2050
    %2060 = vst [vmem:[#allocation8] sm:$0xff] %v2052
    %2061 = vst [vmem:[#allocation8 + $0x8] sm:$0xff] %v2053
    %2062 = vst [vmem:[#allocation8 + $0x10] sm:$0xff] %v2054
    %2063 = vst [vmem:[#allocation8 + $0x18] sm:$0xff] %v2055
    %2064 = vst [vmem:[#allocation8 + $0x20] sm:$0xff] %v2056
    %2065 = vst [vmem:[#allocation8 + $0x28] sm:$0xff] %v2057
    %2066 = vst [vmem:[#allocation8 + $0x30] sm:$0xff] %v2058
    %2067 = vst [vmem:[#allocation8 + $0x38] sm:$0xff] %v2059
    // Predicated region
    $region42: #{tpu_custom_call.1} parent=1 // pred_check
      _
    $region43: #{tpu_custom_call.1} parent=1 // pred_check_branch
      %2069 = sbr.rel (0) target = $region45
    $region44: #{tpu_custom_call.1} parent=1 // pred_region
      %s2071 = ssub.s32 1024, 1024
      %2072 = vsyncadd [#allocation4], %s2071
      %s2074 = sshll.u32 [#allocation8], 4
      %s2075 = int_to_ptr.vmem [resolvable:$true] %s2074
      %2077 = dma.vmem_to_hbm [thread:$0]  %s2075, 1024, %s7, [#allocation4]
    $region45: #{tpu_custom_call.1} parent=1 // pred_fallthru
      _
    // Predicated region
    $region46: #{tpu_custom_call.1} parent=1 // pred_check
      _
    $region47: #{tpu_custom_call.1} parent=1 // pred_check_branch
      %2079 = sbr.rel (0) target = $region49
    $region48: #{tpu_custom_call.1} parent=1 // pred_region
      %2080 = dma.done [#allocation4], 1024
    $region49: #{tpu_custom_call.1} parent=1 // pred_fallthru
      _
    %2081 = vsyncpa [#allocation3], 1
    %2082 = vsyncpa [#allocation6], 1
    %2083 = vsyncpa [#allocation4], 1

</llo_original>
